<compile_context>
chip_gen: v6e
topology: v6e:2x2x1
jax: 0.10.0
libtpu: 0.0.40
codegen_flags: <defaults>
</compile_context>

<pallas_src>
import functools

import jax
import jax.numpy as jnp
from jax.experimental import pallas as pl
from jax.experimental.pallas import tpu as pltpu


def _round_up(x, m):
    return (x + m - 1) // m * m


# ---------------------------------------------------------------------------
# RoIAlign (torchvision semantics, aligned=False) — plain-JAX glue.
# TODO(synk): RoIAlign is a data-dependent bilinear gather; kept in JAX
#             rather than emulating a gather DMA inside a Pallas kernel.
# ---------------------------------------------------------------------------
def roi_align_flat_jax(feature, boxes, output_size, spatial_scale, sampling_ratio):
    """feature: [N,C,H,W] f32; boxes: [K,5] = (batch_idx, x1, y1, x2, y2).

    Returns flattened ROI features [K, C*P*P] in C-major (NCHW-flatten) order,
    ready to feed the Pallas MLP without an extra strided transpose copy.
    """
    N, C, H, W = feature.shape
    P = output_size
    gh = gw = sampling_ratio

    def one_roi(box):
        b = box[0].astype(jnp.int32)
        x1 = box[1] * spatial_scale
        y1 = box[2] * spatial_scale
        x2 = box[3] * spatial_scale
        y2 = box[4] * spatial_scale
        roi_w = jnp.maximum(x2 - x1, 1.0)
        roi_h = jnp.maximum(y2 - y1, 1.0)
        bin_h = roi_h / P
        bin_w = roi_w / P

        ph = jnp.arange(P, dtype=jnp.float32)
        iy = jnp.arange(gh, dtype=jnp.float32)
        ix = jnp.arange(gw, dtype=jnp.float32)
        ys = (y1 + ph[:, None] * bin_h + (iy[None, :] + 0.5) * bin_h / gh).reshape(-1)
        xs = (x1 + ph[:, None] * bin_w + (ix[None, :] + 0.5) * bin_w / gw).reshape(-1)

        fmap = feature[b]  # [C, H, W]

        def bilinear(y, x):
            # torchvision: sample contributes 0 when y < -1 or y > H (same for x).
            valid = (y >= -1.0) & (y <= float(H)) & (x >= -1.0) & (x <= float(W))
            y = jnp.clip(y, 0.0, float(H - 1))
            x = jnp.clip(x, 0.0, float(W - 1))
            y0 = jnp.floor(y).astype(jnp.int32)
            x0 = jnp.floor(x).astype(jnp.int32)
            y1i = jnp.minimum(y0 + 1, H - 1)
            x1i = jnp.minimum(x0 + 1, W - 1)
            ly = y - y0.astype(jnp.float32)
            lx = x - x0.astype(jnp.float32)
            hy = 1.0 - ly
            hx = 1.0 - lx
            v00 = fmap[:, y0, x0]
            v01 = fmap[:, y0, x1i]
            v10 = fmap[:, y1i, x0]
            v11 = fmap[:, y1i, x1i]
            val = hy * hx * v00 + hy * lx * v01 + ly * hx * v10 + ly * lx * v11
            return jnp.where(valid, val, 0.0)

        vals = jax.vmap(lambda yy: jax.vmap(lambda xx: bilinear(yy, xx))(xs))(ys)
        vals = vals.reshape(P, gh, P, gw, C)
        pooled = vals.mean(axis=(1, 3))                   # [P, P, C]
        return jnp.moveaxis(pooled, -1, 0).reshape(-1)    # [C*P*P], C-major

    return jax.vmap(one_roi)(boxes)                       # [K, C*P*P]


# ---------------------------------------------------------------------------
# Pallas: tiled, weight-streaming Linear (+ optional ReLU) kernel.
#   grid = (OUT // tn, IN // tk); reduction axis (k) is LAST, "arbitrary".
#   acc (VMEM f32) is zeroed at k==0; bias + ReLU + store only at the last k.
# ---------------------------------------------------------------------------
def _linear_kernel(x_ref, w_ref, b_ref, out_ref, acc_ref, *, apply_relu):
    k = pl.program_id(1)

    @pl.when(k == 0)
    def _():
        acc_ref[...] = jnp.zeros_like(acc_ref)

    acc_ref[...] += jnp.dot(x_ref[...], w_ref[...],
                            preferred_element_type=jnp.float32)

    @pl.when(k == pl.num_programs(1) - 1)
    def _():
        r = acc_ref[...] + b_ref[...]          # bias only in finalize phase
        if apply_relu:
            r = jnp.maximum(r, 0.0)
        out_ref[...] = r.astype(out_ref.dtype)


def _tpu_vmem_bytes():
    try:
        return int(pltpu.get_tpu_info().vmem_capacity_bytes)
    except Exception:
        return 128 << 20


def _tiling_config():
    """(max_tile, vmem_limit_bytes) — generation aware."""
    vmem = _tpu_vmem_bytes()
    if vmem <= (64 << 20):           # v7x: 64 MiB VMEM/TC -> smaller budget
        return 1024, 48 << 20
    return 2048, 96 << 20            # v5e / v6e: 128 MiB VMEM -> bigger tiles


def _pick_tile(dim, max_tile):
    """Largest multiple-of-128 divisor of `dim` that is <= max_tile."""
    best = 128
    t = 128
    upper = min(max_tile, dim)
    while t <= upper:
        if dim % t == 0:
            best = t
        t += 128
    return best


def linear_pallas(x, w, b, *, apply_relu, out_dtype):
    """x: [Kp, IN] bf16, w: [IN, OUT] bf16, b: [1, OUT] f32.
    Kp % 8 == 0; IN, OUT are multiples of 128 (pre-padded)."""
    Kp, IN = x.shape
    OUT = w.shape[1]
    max_tile, vmem_limit = _tiling_config()
    tk = _pick_tile(IN, max_tile)
    tn = _pick_tile(OUT, max_tile)
    grid = (OUT // tn, IN // tk)

    kernel = functools.partial(_linear_kernel, apply_relu=apply_relu)
    return pl.pallas_call(
        kernel,
        out_shape=jax.ShapeDtypeStruct((Kp, OUT), out_dtype),
        grid_spec=pltpu.PrefetchScalarGridSpec(
            num_scalar_prefetch=0,
            grid=grid,
            in_specs=[
                pl.BlockSpec((Kp, tk), lambda j, k: (0, k)),   # activations
                pl.BlockSpec((tk, tn), lambda j, k: (k, j)),   # streamed weights
                pl.BlockSpec((1, tn), lambda j, k: (0, j)),    # bias
            ],
            out_specs=pl.BlockSpec((Kp, tn), lambda j, k: (0, j)),
            scratch_shapes=[pltpu.VMEM((Kp, tn), jnp.float32)],
        ),
        compiler_params=pltpu.CompilerParams(
            dimension_semantics=("parallel", "arbitrary"),
            vmem_limit_bytes=vmem_limit,
        ),
    )(x, w, b)


# ---------------------------------------------------------------------------
# Parameters (mirrors ILinearReLU / default nn.Linear init), padding, forward.
# ---------------------------------------------------------------------------
def init_params(key, in_dim, hidden_dim, out_dim):
    k1, k2, k3, k4 = jax.random.split(key, 4)
    # ILinearReLU: kaiming_normal_(relu), fan_in -> std = sqrt(2/fan_in); bias = 0.
    w1 = jax.random.normal(k1, (in_dim, hidden_dim), jnp.float32) * jnp.sqrt(2.0 / in_dim)
    b1 = jnp.zeros((hidden_dim,), jnp.float32)
    w2 = jax.random.normal(k2, (hidden_dim, hidden_dim), jnp.float32) * jnp.sqrt(2.0 / hidden_dim)
    b2 = jnp.zeros((hidden_dim,), jnp.float32)
    # final nn.Linear default init: U(-1/sqrt(fan_in), 1/sqrt(fan_in))
    bound = 1.0 / (hidden_dim ** 0.5)
    w3 = jax.random.uniform(k3, (hidden_dim, out_dim), jnp.float32, -bound, bound)
    b3 = jax.random.uniform(k4, (out_dim,), jnp.float32, -bound, bound)
    return (w1, b1, w2, b2, w3, b3)


def prepare_params(params, in_dim, hidden_dim, out_dim):
    """Zero-pad dims to multiples of 128 lanes, cast weights to bf16 (streamed),
    keep biases f32 (added after the f32 accumulate)."""
    in_p = _round_up(in_dim, 128)
    hid_p = _round_up(hidden_dim, 128)
    out_p = _round_up(out_dim, 128)
    w1, b1, w2, b2, w3, b3 = params

    def pad_w(w, rp, cp):
        r, c = w.shape
        return jnp.zeros((rp, cp), jnp.bfloat16).at[:r, :c].set(w.astype(jnp.bfloat16))

    def pad_b(b, cp):
        return jnp.zeros((1, cp), jnp.float32).at[0, :b.shape[0]].set(b)

    padded = (pad_w(w1, in_p, hid_p), pad_b(b1, hid_p),
              pad_w(w2, hid_p, hid_p), pad_b(b2, hid_p),
              pad_w(w3, hid_p, out_p), pad_b(b3, out_p))
    return padded, (in_p, hid_p, out_p)


def make_rotation_regressor(params, in_dim, hidden_dim, out_dim, *,
                            roi_shape=7, spatial_scale=1.0 / 8.0,
                            sampling_ratio=2):
    padded_params, (in_p, _hid_p, _out_p) = prepare_params(
        params, in_dim, hidden_dim, out_dim)

    def _forward(feature, bbx, pp):
        w1, b1, w2, b2, w3, b3 = pp
        x = roi_align_flat_jax(feature, bbx, roi_shape, spatial_scale,
                               sampling_ratio)                     # [K, in_dim]
        K, D = x.shape
        Kp = max(8, _round_up(K, 8))                               # sublane-align M
        xp = jnp.zeros((Kp, in_p), jnp.bfloat16).at[:K, :D].set(
            x.astype(jnp.bfloat16))

        h1 = linear_pallas(xp, w1, b1, apply_relu=True, out_dtype=jnp.bfloat16)
        # nn.Dropout(): identity at inference (eval mode).
        h2 = linear_pallas(h1, w2, b2, apply_relu=True, out_dtype=jnp.bfloat16)
        y = linear_pallas(h2, w3, b3, apply_relu=False, out_dtype=jnp.float32)
        return y[:K, :out_dim]                                     # strip padding

    fwd = jax.jit(_forward)
    return lambda feature, bbx: fwd(feature, bbx, padded_params)


# ---------------------------------------------------------------------------
# Small-shape smoke test + reference check.
# ---------------------------------------------------------------------------
if __name__ == "__main__":
    feature_dim = 32        # (module default 256; reduced for a small example)
    roi_shape = 7
    hidden_dim = 128        # (module default 4096; reduced for a small example)
    num_classes = 10
    N, H, W = 2, 16, 16
    n_rois = 4

    key = jax.random.PRNGKey(0)
    k_feat, k_xy, k_wh, k_params = jax.random.split(key, 4)

    feature = jax.random.normal(k_feat, (N, feature_dim, H, W), jnp.float32)

    # boxes in image coordinates (feature map is image / 8 -> image ~128 px)
    xy1 = jax.random.uniform(k_xy, (n_rois, 2), jnp.float32, 0.0, 60.0)
    wh = jax.random.uniform(k_wh, (n_rois, 2), jnp.float32, 8.0, 60.0)
    batch_idx = jnp.array([0.0, 0.0, 1.0, 1.0], jnp.float32)[:, None]
    bbx = jnp.concatenate([batch_idx, xy1, xy1 + wh], axis=1)      # [K, 5]

    in_dim = feature_dim * roi_shape * roi_shape
    out_dim = 4 * num_classes
    params = init_params(k_params, in_dim, hidden_dim, out_dim)

    forward = make_rotation_regressor(params, in_dim, hidden_dim, out_dim,
                                      roi_shape=roi_shape)
    quaternion = jax.block_until_ready(forward(feature, bbx))

    assert quaternion.shape == (n_rois, out_dim)
    assert quaternion.dtype == jnp.float32
    assert bool(jnp.all(jnp.isfinite(quaternion)))

    # Pure-JAX reference on the same bf16-quantized weights (f32 matmuls).
    x_ref = roi_align_flat_jax(feature, bbx, roi_shape, 1.0 / 8.0, 2)
    w1, b1, w2, b2, w3, b3 = params
    xq = x_ref.astype(jnp.bfloat16).astype(jnp.float32)
    w1q = w1.astype(jnp.bfloat16).astype(jnp.float32)
    w2q = w2.astype(jnp.bfloat16).astype(jnp.float32)
    w3q = w3.astype(jnp.bfloat16).astype(jnp.float32)
    h1 = jnp.maximum(xq @ w1q + b1, 0.0)
    h2 = jnp.maximum(h1 @ w2q + b2, 0.0)
    ref = h2 @ w3q + b3
    max_err = float(jnp.max(jnp.abs(quaternion - ref)))
    assert jnp.allclose(quaternion, ref, rtol=5e-2, atol=5e-2), max_err

    print("KERNEL_OK")
</pallas_src>

<mosaic_0001>
module attributes {stable_mosaic.version = 11 : i64} {
  func.func @_linear_kernel(%arg0: i32, %arg1: i32, %arg2: memref<8x1664xbf16, #tpu.memory_space<vmem>>, %arg3: memref<1664x128xbf16, #tpu.memory_space<vmem>>, %arg4: memref<1x128xf32, #tpu.memory_space<vmem>>, %arg5: memref<8x128xbf16, #tpu.memory_space<vmem>>, %arg6: memref<8x128xf32, #tpu.memory_space<vmem>>) attributes {dimension_semantics = [#tpu.dimension_semantics<parallel>, #tpu.dimension_semantics<arbitrary>], iteration_bounds = array<i64: 1, 1>, scalar_prefetch = 0 : i64, scratch_operands = 1 : i64, tpu.core_type = #tpu.core_type<tc>, window_params = [{transform_indices = @transform_0, window_bounds = array<i64: 8, 1664>}, {transform_indices = @transform_1, window_bounds = array<i64: 1664, 128>}, {transform_indices = @transform_2, window_bounds = array<i64: 1, 128>}, {transform_indices = @transform_3, window_bounds = array<i64: 8, 128>}]} {
    %c0_i32 = arith.constant 0 : i32
    %0 = arith.cmpi eq, %arg1, %c0_i32 : i32
    %1 = arith.extui %0 : i1 to i32
    %c0_i32_0 = arith.constant 0 : i32
    %2 = arith.cmpi ne, %1, %c0_i32_0 : i32
    scf.if %2 {
      %cst_10 = arith.constant 0.000000e+00 : f32
      %12 = vector.broadcast %cst_10 : f32 to vector<8x128xf32>
      %c0_11 = arith.constant 0 : index
      %c0_12 = arith.constant 0 : index
      %13 = vector.load %arg6[%c0_11, %c0_12] : memref<8x128xf32, #tpu.memory_space<vmem>>, vector<8x128xf32>
      tpu.vector_store %arg6[%c0_11, %c0_12], %12 {strides = array<i32>} : memref<8x128xf32, #tpu.memory_space<vmem>>, vector<8x128xf32>,
    } else {
    }
    %c0 = arith.constant 0 : index
    %c0_1 = arith.constant 0 : index
    %3 = vector.load %arg6[%c0, %c0_1] : memref<8x128xf32, #tpu.memory_space<vmem>>, vector<8x128xf32>
    %c0_2 = arith.constant 0 : index
    %c0_3 = arith.constant 0 : index
    %4 = vector.load %arg2[%c0_2, %c0_3] : memref<8x1664xbf16, #tpu.memory_space<vmem>>, vector<8x1664xbf16>
    %c0_4 = arith.constant 0 : index
    %c0_5 = arith.constant 0 : index
    %5 = vector.load %arg3[%c0_4, %c0_5] : memref<1664x128xbf16, #tpu.memory_space<vmem>>, vector<1664x128xbf16>
    %cst = arith.constant dense<0.000000e+00> : vector<8x128xf32>
    %6 = tpu.matmul %4, %5, %cst {dimension_numbers = #tpu.dot_dimension_numbers<[1], [0], [0], [1], [0, 0, 1, 1], [], []>} : vector<8x1664xbf16>, vector<1664x128xbf16>, vector<8x128xf32> -> vector<8x128xf32>
    %7 = arith.addf %3, %6 : vector<8x128xf32>
    %c0_6 = arith.constant 0 : index
    %c0_7 = arith.constant 0 : index
    %8 = vector.load %arg6[%c0_6, %c0_7] : memref<8x128xf32, #tpu.memory_space<vmem>>, vector<8x128xf32>
    tpu.vector_store %arg6[%c0_6, %c0_7], %7 {strides = array<i32>} : memref<8x128xf32, #tpu.memory_space<vmem>>, vector<8x128xf32>,
    %c0_i32_8 = arith.constant 0 : i32
    %9 = arith.cmpi eq, %arg1, %c0_i32_8 : i32
    %10 = arith.extui %9 : i1 to i32
    %c0_i32_9 = arith.constant 0 : i32
    %11 = arith.cmpi ne, %10, %c0_i32_9 : i32
    scf.if %11 {
      %c0_10 = arith.constant 0 : index
      %c0_11 = arith.constant 0 : index
      %12 = vector.load %arg6[%c0_10, %c0_11] : memref<8x128xf32, #tpu.memory_space<vmem>>, vector<8x128xf32>
      %c0_12 = arith.constant 0 : index
      %c0_13 = arith.constant 0 : index
      %13 = vector.load %arg4[%c0_12, %c0_13] : memref<1x128xf32, #tpu.memory_space<vmem>>, vector<1x128xf32>
      %14 = vector.broadcast %13 : vector<1x128xf32> to vector<8x128xf32>
      %15 = arith.addf %12, %14 : vector<8x128xf32>
      %cst_14 = arith.constant 0.000000e+00 : f32
      %16 = vector.broadcast %cst_14 : f32 to vector<8x128xf32>
      %17 = arith.maximumf %15, %16 : vector<8x128xf32>
      %18 = arith.truncf %17 : vector<8x128xf32> to vector<8x128xbf16>
      %c0_15 = arith.constant 0 : index
      %c0_16 = arith.constant 0 : index
      %19 = vector.load %arg5[%c0_15, %c0_16] : memref<8x128xbf16, #tpu.memory_space<vmem>>, vector<8x128xbf16>
      tpu.vector_store %arg5[%c0_15, %c0_16], %18 {strides = array<i32>} : memref<8x128xbf16, #tpu.memory_space<vmem>>, vector<8x128xbf16>,
    } else {
    }
    return
  }
  func.func @transform_0(%arg0: i32, %arg1: i32) -> (i32, i32) {
    %c0_i32 = arith.constant 0 : i32
    %c0_i32_0 = arith.constant 0 : i32
    return %c0_i32, %arg1 : i32, i32
  }
  func.func @transform_1(%arg0: i32, %arg1: i32) -> (i32, i32) {
    %c0_i32 = arith.constant 0 : i32
    return %arg1, %arg0 : i32, i32
  }
  func.func @transform_2(%arg0: i32, %arg1: i32) -> (i32, i32) {
    %c0_i32 = arith.constant 0 : i32
    %c0_i32_0 = arith.constant 0 : i32
    return %c0_i32, %arg0 : i32, i32
  }
  func.func @transform_3(%arg0: i32, %arg1: i32) -> (i32, i32) {
    %c0_i32 = arith.constant 0 : i32
    %c0_i32_0 = arith.constant 0 : i32
    return %c0_i32, %arg0 : i32, i32
  }
}

module attributes {stable_mosaic.version = 11 : i64} {
  func.func @_linear_kernel(%arg0: i32, %arg1: i32, %arg2: memref<8x128xbf16, #tpu.memory_space<vmem>>, %arg3: memref<128x128xbf16, #tpu.memory_space<vmem>>, %arg4: memref<1x128xf32, #tpu.memory_space<vmem>>, %arg5: memref<8x128xbf16, #tpu.memory_space<vmem>>, %arg6: memref<8x128xf32, #tpu.memory_space<vmem>>) attributes {dimension_semantics = [#tpu.dimension_semantics<parallel>, #tpu.dimension_semantics<arbitrary>], iteration_bounds = array<i64: 1, 1>, scalar_prefetch = 0 : i64, scratch_operands = 1 : i64, tpu.core_type = #tpu.core_type<tc>, window_params = [{transform_indices = @transform_0, window_bounds = array<i64: 8, 128>}, {transform_indices = @transform_1, window_bounds = array<i64: 128, 128>}, {transform_indices = @transform_2, window_bounds = array<i64: 1, 128>}, {transform_indices = @transform_3, window_bounds = array<i64: 8, 128>}]} {
    %c0_i32 = arith.constant 0 : i32
    %0 = arith.cmpi eq, %arg1, %c0_i32 : i32
    %1 = arith.extui %0 : i1 to i32
    %c0_i32_0 = arith.constant 0 : i32
    %2 = arith.cmpi ne, %1, %c0_i32_0 : i32
    scf.if %2 {
      %cst_10 = arith.constant 0.000000e+00 : f32
      %12 = vector.broadcast %cst_10 : f32 to vector<8x128xf32>
      %c0_11 = arith.constant 0 : index
      %c0_12 = arith.constant 0 : index
      %13 = vector.load %arg6[%c0_11, %c0_12] : memref<8x128xf32, #tpu.memory_space<vmem>>, vector<8x128xf32>
      tpu.vector_store %arg6[%c0_11, %c0_12], %12 {strides = array<i32>} : memref<8x128xf32, #tpu.memory_space<vmem>>, vector<8x128xf32>,
    } else {
    }
    %c0 = arith.constant 0 : index
    %c0_1 = arith.constant 0 : index
    %3 = vector.load %arg6[%c0, %c0_1] : memref<8x128xf32, #tpu.memory_space<vmem>>, vector<8x128xf32>
    %c0_2 = arith.constant 0 : index
    %c0_3 = arith.constant 0 : index
    %4 = vector.load %arg2[%c0_2, %c0_3] : memref<8x128xbf16, #tpu.memory_space<vmem>>, vector<8x128xbf16>
    %c0_4 = arith.constant 0 : index
    %c0_5 = arith.constant 0 : index
    %5 = vector.load %arg3[%c0_4, %c0_5] : memref<128x128xbf16, #tpu.memory_space<vmem>>, vector<128x128xbf16>
    %cst = arith.constant dense<0.000000e+00> : vector<8x128xf32>
    %6 = tpu.matmul %4, %5, %cst {dimension_numbers = #tpu.dot_dimension_numbers<[1], [0], [0], [1], [0, 0, 1, 1], [], []>} : vector<8x128xbf16>, vector<128x128xbf16>, vector<8x128xf32> -> vector<8x128xf32>
    %7 = arith.addf %3, %6 : vector<8x128xf32>
    %c0_6 = arith.constant 0 : index
    %c0_7 = arith.constant 0 : index
    %8 = vector.load %arg6[%c0_6, %c0_7] : memref<8x128xf32, #tpu.memory_space<vmem>>, vector<8x128xf32>
    tpu.vector_store %arg6[%c0_6, %c0_7], %7 {strides = array<i32>} : memref<8x128xf32, #tpu.memory_space<vmem>>, vector<8x128xf32>,
    %c0_i32_8 = arith.constant 0 : i32
    %9 = arith.cmpi eq, %arg1, %c0_i32_8 : i32
    %10 = arith.extui %9 : i1 to i32
    %c0_i32_9 = arith.constant 0 : i32
    %11 = arith.cmpi ne, %10, %c0_i32_9 : i32
    scf.if %11 {
      %c0_10 = arith.constant 0 : index
      %c0_11 = arith.constant 0 : index
      %12 = vector.load %arg6[%c0_10, %c0_11] : memref<8x128xf32, #tpu.memory_space<vmem>>, vector<8x128xf32>
      %c0_12 = arith.constant 0 : index
      %c0_13 = arith.constant 0 : index
      %13 = vector.load %arg4[%c0_12, %c0_13] : memref<1x128xf32, #tpu.memory_space<vmem>>, vector<1x128xf32>
      %14 = vector.broadcast %13 : vector<1x128xf32> to vector<8x128xf32>
      %15 = arith.addf %12, %14 : vector<8x128xf32>
      %cst_14 = arith.constant 0.000000e+00 : f32
      %16 = vector.broadcast %cst_14 : f32 to vector<8x128xf32>
      %17 = arith.maximumf %15, %16 : vector<8x128xf32>
      %18 = arith.truncf %17 : vector<8x128xf32> to vector<8x128xbf16>
      %c0_15 = arith.constant 0 : index
      %c0_16 = arith.constant 0 : index
      %19 = vector.load %arg5[%c0_15, %c0_16] : memref<8x128xbf16, #tpu.memory_space<vmem>>, vector<8x128xbf16>
      tpu.vector_store %arg5[%c0_15, %c0_16], %18 {strides = array<i32>} : memref<8x128xbf16, #tpu.memory_space<vmem>>, vector<8x128xbf16>,
    } else {
    }
    return
  }
  func.func @transform_0(%arg0: i32, %arg1: i32) -> (i32, i32) {
    %c0_i32 = arith.constant 0 : i32
    %c0_i32_0 = arith.constant 0 : i32
    return %c0_i32, %arg1 : i32, i32
  }
  func.func @transform_1(%arg0: i32, %arg1: i32) -> (i32, i32) {
    %c0_i32 = arith.constant 0 : i32
    return %arg1, %arg0 : i32, i32
  }
  func.func @transform_2(%arg0: i32, %arg1: i32) -> (i32, i32) {
    %c0_i32 = arith.constant 0 : i32
    %c0_i32_0 = arith.constant 0 : i32
    return %c0_i32, %arg0 : i32, i32
  }
  func.func @transform_3(%arg0: i32, %arg1: i32) -> (i32, i32) {
    %c0_i32 = arith.constant 0 : i32
    %c0_i32_0 = arith.constant 0 : i32
    return %c0_i32, %arg0 : i32, i32
  }
}

module attributes {stable_mosaic.version = 11 : i64} {
  func.func @_linear_kernel(%arg0: i32, %arg1: i32, %arg2: memref<8x128xbf16, #tpu.memory_space<vmem>>, %arg3: memref<128x128xbf16, #tpu.memory_space<vmem>>, %arg4: memref<1x128xf32, #tpu.memory_space<vmem>>, %arg5: memref<8x128xf32, #tpu.memory_space<vmem>>, %arg6: memref<8x128xf32, #tpu.memory_space<vmem>>) attributes {dimension_semantics = [#tpu.dimension_semantics<parallel>, #tpu.dimension_semantics<arbitrary>], iteration_bounds = array<i64: 1, 1>, scalar_prefetch = 0 : i64, scratch_operands = 1 : i64, tpu.core_type = #tpu.core_type<tc>, window_params = [{transform_indices = @transform_0, window_bounds = array<i64: 8, 128>}, {transform_indices = @transform_1, window_bounds = array<i64: 128, 128>}, {transform_indices = @transform_2, window_bounds = array<i64: 1, 128>}, {transform_indices = @transform_3, window_bounds = array<i64: 8, 128>}]} {
    %c0_i32 = arith.constant 0 : i32
    %0 = arith.cmpi eq, %arg1, %c0_i32 : i32
    %1 = arith.extui %0 : i1 to i32
    %c0_i32_0 = arith.constant 0 : i32
    %2 = arith.cmpi ne, %1, %c0_i32_0 : i32
    scf.if %2 {
      %cst_10 = arith.constant 0.000000e+00 : f32
      %12 = vector.broadcast %cst_10 : f32 to vector<8x128xf32>
      %c0_11 = arith.constant 0 : index
      %c0_12 = arith.constant 0 : index
      %13 = vector.load %arg6[%c0_11, %c0_12] : memref<8x128xf32, #tpu.memory_space<vmem>>, vector<8x128xf32>
      tpu.vector_store %arg6[%c0_11, %c0_12], %12 {strides = array<i32>} : memref<8x128xf32, #tpu.memory_space<vmem>>, vector<8x128xf32>,
    } else {
    }
    %c0 = arith.constant 0 : index
    %c0_1 = arith.constant 0 : index
    %3 = vector.load %arg6[%c0, %c0_1] : memref<8x128xf32, #tpu.memory_space<vmem>>, vector<8x128xf32>
    %c0_2 = arith.constant 0 : index
    %c0_3 = arith.constant 0 : index
    %4 = vector.load %arg2[%c0_2, %c0_3] : memref<8x128xbf16, #tpu.memory_space<vmem>>, vector<8x128xbf16>
    %c0_4 = arith.constant 0 : index
    %c0_5 = arith.constant 0 : index
    %5 = vector.load %arg3[%c0_4, %c0_5] : memref<128x128xbf16, #tpu.memory_space<vmem>>, vector<128x128xbf16>
    %cst = arith.constant dense<0.000000e+00> : vector<8x128xf32>
    %6 = tpu.matmul %4, %5, %cst {dimension_numbers = #tpu.dot_dimension_numbers<[1], [0], [0], [1], [0, 0, 1, 1], [], []>} : vector<8x128xbf16>, vector<128x128xbf16>, vector<8x128xf32> -> vector<8x128xf32>
    %7 = arith.addf %3, %6 : vector<8x128xf32>
    %c0_6 = arith.constant 0 : index
    %c0_7 = arith.constant 0 : index
    %8 = vector.load %arg6[%c0_6, %c0_7] : memref<8x128xf32, #tpu.memory_space<vmem>>, vector<8x128xf32>
    tpu.vector_store %arg6[%c0_6, %c0_7], %7 {strides = array<i32>} : memref<8x128xf32, #tpu.memory_space<vmem>>, vector<8x128xf32>,
    %c0_i32_8 = arith.constant 0 : i32
    %9 = arith.cmpi eq, %arg1, %c0_i32_8 : i32
    %10 = arith.extui %9 : i1 to i32
    %c0_i32_9 = arith.constant 0 : i32
    %11 = arith.cmpi ne, %10, %c0_i32_9 : i32
    scf.if %11 {
      %c0_10 = arith.constant 0 : index
      %c0_11 = arith.constant 0 : index
      %12 = vector.load %arg6[%c0_10, %c0_11] : memref<8x128xf32, #tpu.memory_space<vmem>>, vector<8x128xf32>
      %c0_12 = arith.constant 0 : index
      %c0_13 = arith.constant 0 : index
      %13 = vector.load %arg4[%c0_12, %c0_13] : memref<1x128xf32, #tpu.memory_space<vmem>>, vector<1x128xf32>
      %14 = vector.broadcast %13 : vector<1x128xf32> to vector<8x128xf32>
      %15 = arith.addf %12, %14 : vector<8x128xf32>
      %c0_14 = arith.constant 0 : index
      %c0_15 = arith.constant 0 : index
      %16 = vector.load %arg5[%c0_14, %c0_15] : memref<8x128xf32, #tpu.memory_space<vmem>>, vector<8x128xf32>
      tpu.vector_store %arg5[%c0_14, %c0_15], %15 {strides = array<i32>} : memref<8x128xf32, #tpu.memory_space<vmem>>, vector<8x128xf32>,
    } else {
    }
    return
  }
  func.func @transform_0(%arg0: i32, %arg1: i32) -> (i32, i32) {
    %c0_i32 = arith.constant 0 : i32
    %c0_i32_0 = arith.constant 0 : i32
    return %c0_i32, %arg1 : i32, i32
  }
  func.func @transform_1(%arg0: i32, %arg1: i32) -> (i32, i32) {
    %c0_i32 = arith.constant 0 : i32
    return %arg1, %arg0 : i32, i32
  }
  func.func @transform_2(%arg0: i32, %arg1: i32) -> (i32, i32) {
    %c0_i32 = arith.constant 0 : i32
    %c0_i32_0 = arith.constant 0 : i32
    return %c0_i32, %arg0 : i32, i32
  }
  func.func @transform_3(%arg0: i32, %arg1: i32) -> (i32, i32) {
    %c0_i32 = arith.constant 0 : i32
    %c0_i32_0 = arith.constant 0 : i32
    return %c0_i32, %arg0 : i32, i32
  }
}

</mosaic_0001>

<llo_original>
// kernel: _forward.4
$region0: #{_forward.4}
  #allocation0 [shape = 'u32[]', space=smem, size = 0x4, offset = 0x4, fixed_abs, tag = 'smem constant byte address 0x4 - core index']
  #allocation1 [shape = 'u32[144,128]{1,0:T(1,128)}', space=vmem, size = 0x12000, scoped, tag = 'internal scratch']
  #allocation2 [shape = 'f32[8,128]{1,0:T(8,128)}', space=vmem, size = 0x1000, scoped, tag = 'scratch operand']
  %s0 = inlined_call_operand.vmem [shape: bf16[8,128], index: 0, kind: input, shape index: {}]
  %s1 = inlined_call_operand.vmem [shape: bf16[128,128], index: 1, kind: input, shape index: {}]
  %s2 = inlined_call_operand.vmem [shape: f32[1,128], index: 2, kind: input, shape index: {}]
  %s3 = inlined_call_operand.vmem [shape: bf16[8,128], index: 3, kind: output, shape index: {}]
  %s4 = sld [smem:[#allocation0]]
  $region30: #{_forward.4} parent=0
    _
  %s6 = ssub.s32 1, %s4
  %s7 = scalar_select 0, %s6, %s4
  // Predicated region
  $region2: #{_forward.4} parent=0 // pred_check
    _
  $region3: #{_forward.4} parent=0 // pred_check_branch
    %9 = sbr.rel (0) target = $region5
  $region4: #{_forward.4} parent=0 // pred_region
    _
  $region5: #{_forward.4} parent=0 // pred_fallthru
    _
  // Predicated region
  $region6: #{_forward.4} parent=0 // pred_check
    _
  $region7: #{_forward.4} parent=0 // pred_check_branch
    %11 = sbr.rel (0) target = $region9
  $region8: #{_forward.4} parent=0 // pred_region
    _
  $region9: #{_forward.4} parent=0 // pred_fallthru
    _
  // Predicated region
  $region10: #{_forward.4} parent=0 // pred_check
    _
  $region11: #{_forward.4} parent=0 // pred_check_branch
    %13 = sbr.rel (0) target = $region13
  $region12: #{_forward.4} parent=0 // pred_region
    _
  $region13: #{_forward.4} parent=0 // pred_fallthru
    _
  %p15 = scmp.eq.s32.totalorder 0, 0
  // Predicated region
  $region14: #{_forward.4} parent=0 // pred_check
    %p16 = pneg %p15
  $region15: #{_forward.4} parent=0 // pred_check_branch
    %18 = sbr.rel (%p16) target = $region17
  $region16: #{_forward.4} parent=0 // pred_region
    %19 = vst [vmem:[#allocation2] sm:$0xff] 0.0
  $region17: #{_forward.4} parent=0 // pred_fallthru
    _
  %v20 = vld [vmem:[#allocation2] sm:$0xff]
  %v21 = vld [vmem:[%s0] sm:$0xf]
  %v22 = vld [vmem:[%s1] sm:$0xf]
  %v23 = vld [vmem:[%s1 + $0x4] sm:$0xf]
  %v24 = vld [vmem:[%s1 + $0x8] sm:$0xf]
  %v25 = vld [vmem:[%s1 + $0xc] sm:$0xf]
  %v26 = vld [vmem:[%s1 + $0x10] sm:$0xf]
  %v27 = vld [vmem:[%s1 + $0x14] sm:$0xf]
  %v28 = vld [vmem:[%s1 + $0x18] sm:$0xf]
  %v29 = vld [vmem:[%s1 + $0x1c] sm:$0xf]
  %v30 = vld [vmem:[%s1 + $0x20] sm:$0xf]
  %v31 = vld [vmem:[%s1 + $0x24] sm:$0xf]
  %v32 = vld [vmem:[%s1 + $0x28] sm:$0xf]
  %v33 = vld [vmem:[%s1 + $0x2c] sm:$0xf]
  %v34 = vld [vmem:[%s1 + $0x30] sm:$0xf]
  %v35 = vld [vmem:[%s1 + $0x34] sm:$0xf]
  %v36 = vld [vmem:[%s1 + $0x38] sm:$0xf]
  %v37 = vld [vmem:[%s1 + $0x3c] sm:$0xf]
  %v54 = vunpack.c.l.b16 %v22
  %v55 = vunpack.c.l.b16 %v23
  %v56 = vunpack.c.l.b16 %v24
  %v57 = vunpack.c.l.b16 %v25
  %v58 = vunpack.c.l.b16 %v26
  %v59 = vunpack.c.l.b16 %v27
  %v60 = vunpack.c.l.b16 %v28
  %v61 = vunpack.c.l.b16 %v29
  %v62 = vunpack.c.l.b16 %v30
  %v63 = vunpack.c.l.b16 %v31
  %v64 = vunpack.c.l.b16 %v32
  %v65 = vunpack.c.l.b16 %v33
  %v66 = vunpack.c.l.b16 %v34
  %v67 = vunpack.c.l.b16 %v35
  %v68 = vunpack.c.l.b16 %v36
  %v69 = vunpack.c.l.b16 %v37
  %v70 = vpack.c.b16 %v55, %v54
  %v71 = vpack.c.b16 %v57, %v56
  %v72 = vpack.c.b16 %v59, %v58
  %v73 = vpack.c.b16 %v61, %v60
  %v74 = vpack.c.b16 %v63, %v62
  %v75 = vpack.c.b16 %v65, %v64
  %v76 = vpack.c.b16 %v67, %v66
  %v77 = vpack.c.b16 %v69, %v68
  %86 = vmatprep.subr.bf16.mxu0 0
  %87 = vmatpush1.bf16.msra.mxu0 %v77
  %88 = vmatprep.subr.bf16.mxu0 0
  %89 = vmatpush1.bf16.msra.mxu0 %v76
  %90 = vmatprep.subr.bf16.mxu0 0
  %91 = vmatpush1.bf16.msra.mxu0 %v75
  %92 = vmatprep.subr.bf16.mxu0 0
  %93 = vmatpush1.bf16.msra.mxu0 %v74
  %94 = vmatprep.subr.bf16.mxu0 0
  %95 = vmatpush1.bf16.msra.mxu0 %v73
  %96 = vmatprep.subr.bf16.mxu0 0
  %97 = vmatpush1.bf16.msra.mxu0 %v72
  %98 = vmatprep.subr.bf16.mxu0 0
  %99 = vmatpush1.bf16.msra.mxu0 %v71
  %100 = vmatprep.subr.bf16.mxu0 0
  %101 = vmatpush1.bf16.msra.mxu0 %v70
  %102 = vmatprep.subr.bf16.mxu0 0
  %103 = vmatpush2.bf16.msra.mxu0 0
  %104 = vmatprep.subr.bf16.mxu0 0
  %105 = vmatpush2.bf16.msra.mxu0 0
  %106 = vmatprep.subr.bf16.mxu0 0
  %107 = vmatpush2.bf16.msra.mxu0 0
  %108 = vmatprep.subr.bf16.mxu0 0
  %109 = vmatpush2.bf16.msra.mxu0 0
  %110 = vmatprep.subr.bf16.mxu0 0
  %111 = vmatpush2.bf16.msra.mxu0 0
  %112 = vmatprep.subr.bf16.mxu0 0
  %113 = vmatpush2.bf16.msra.mxu0 0
  %114 = vmatprep.subr.bf16.mxu0 0
  %115 = vmatpush2.bf16.msra.mxu0 0
  %116 = vmatprep.subr.bf16.mxu0 0
  %117 = vmatpush2.bf16.msra.mxu0 0
  %118 = vmatprep.mubr.bf16.mxu0 0
  %119 = vmatmul.mubr.bf16.gmra.mxu0 %v21
  %v120 = vpop.f32.mrf.mxu0
  %v121 = vadd.f32 0.0, %v120
  %v122 = vpop.f32.mrf.mxu0
  %v123 = vpop.f32.mrf.mxu0
  %v124 = vpop.f32.mrf.mxu0
  %125 = vdwg.mxu0
  %v126 = vadd.f32 %v20, %v121
  %127 = vst [vmem:[#allocation2] sm:$0xff] %v126
  // Predicated region
  $region18: #{_forward.4} parent=0 // pred_check
    %p128 = pneg %p15
  $region19: #{_forward.4} parent=0 // pred_check_branch
    %130 = sbr.rel (%p128) target = $region21
  $region20: #{_forward.4} parent=0 // pred_region
    %v131 = vld [vmem:[#allocation2] sm:$0xff]
    %v132 = vld [vmem:[%s2] sm:$0x1]
    %v134 = vlaneseq
    %v135 = vshrl.u32 %v134, 7
    %v136 = vsub.s32 0, %v135
    %v137 = vrot.slane %v132, %v136
    %v139 = vadd.f32 %v131, %v137
    %v140 = vmax.f32 %v139, 0.0
    %v141 = vpack.c.bf16 %v140, %v140
    %142 = vst [vmem:[%s3] sm:$0xf] %v141
  $region21: #{_forward.4} parent=0 // pred_fallthru
    _
  // Predicated region
  $region22: #{_forward.4} parent=0 // pred_check
    _
  $region23: #{_forward.4} parent=0 // pred_check_branch
    %144 = sbr.rel (0) target = $region25
  $region24: #{_forward.4} parent=0 // pred_region
    _
  $region25: #{_forward.4} parent=0 // pred_fallthru
    _
  // Predicated region
  $region26: #{_forward.4} parent=0 // pred_check
    _
  $region27: #{_forward.4} parent=0 // pred_check_branch
    %146 = sbr.rel (0) target = $region29
  $region28: #{_forward.4} parent=0 // pred_region
    _
  $region29: #{_forward.4} parent=0 // pred_fallthru
    _

// kernel: _forward.5
$region0: #{_forward.5}
  #allocation0 [shape = 'u32[]', space=smem, size = 0x4, offset = 0x4, fixed_abs, tag = 'smem constant byte address 0x4 - core index']
  #allocation1 [shape = 'u32[144,128]{1,0:T(1,128)}', space=vmem, size = 0x12000, scoped, tag = 'internal scratch']
  #allocation2 [shape = 'f32[8,128]{1,0:T(8,128)}', space=vmem, size = 0x1000, scoped, tag = 'scratch operand']
  %s0 = inlined_call_operand.vmem [shape: bf16[8,128], index: 0, kind: input, shape index: {}]
  %s1 = inlined_call_operand.vmem [shape: bf16[128,128], index: 1, kind: input, shape index: {}]
  %s2 = inlined_call_operand.vmem [shape: f32[1,128], index: 2, kind: input, shape index: {}]
  %s3 = inlined_call_operand.vmem [shape: f32[8,128], index: 3, kind: output, shape index: {}]
  %s4 = sld [smem:[#allocation0]]
  $region30: #{_forward.5} parent=0
    _
  %s6 = ssub.s32 1, %s4
  %s7 = scalar_select 0, %s6, %s4
  // Predicated region
  $region2: #{_forward.5} parent=0 // pred_check
    _
  $region3: #{_forward.5} parent=0 // pred_check_branch
    %9 = sbr.rel (0) target = $region5
  $region4: #{_forward.5} parent=0 // pred_region
    _
  $region5: #{_forward.5} parent=0 // pred_fallthru
    _
  // Predicated region
  $region6: #{_forward.5} parent=0 // pred_check
    _
  $region7: #{_forward.5} parent=0 // pred_check_branch
    %11 = sbr.rel (0) target = $region9
  $region8: #{_forward.5} parent=0 // pred_region
    _
  $region9: #{_forward.5} parent=0 // pred_fallthru
    _
  // Predicated region
  $region10: #{_forward.5} parent=0 // pred_check
    _
  $region11: #{_forward.5} parent=0 // pred_check_branch
    %13 = sbr.rel (0) target = $region13
  $region12: #{_forward.5} parent=0 // pred_region
    _
  $region13: #{_forward.5} parent=0 // pred_fallthru
    _
  %p15 = scmp.eq.s32.totalorder 0, 0
  // Predicated region
  $region14: #{_forward.5} parent=0 // pred_check
    %p16 = pneg %p15
  $region15: #{_forward.5} parent=0 // pred_check_branch
    %18 = sbr.rel (%p16) target = $region17
  $region16: #{_forward.5} parent=0 // pred_region
    %19 = vst [vmem:[#allocation2] sm:$0xff] 0.0
  $region17: #{_forward.5} parent=0 // pred_fallthru
    _
  %v20 = vld [vmem:[#allocation2] sm:$0xff]
  %v21 = vld [vmem:[%s0] sm:$0xf]
  %v22 = vld [vmem:[%s1] sm:$0xf]
  %v23 = vld [vmem:[%s1 + $0x4] sm:$0xf]
  %v24 = vld [vmem:[%s1 + $0x8] sm:$0xf]
  %v25 = vld [vmem:[%s1 + $0xc] sm:$0xf]
  %v26 = vld [vmem:[%s1 + $0x10] sm:$0xf]
  %v27 = vld [vmem:[%s1 + $0x14] sm:$0xf]
  %v28 = vld [vmem:[%s1 + $0x18] sm:$0xf]
  %v29 = vld [vmem:[%s1 + $0x1c] sm:$0xf]
  %v30 = vld [vmem:[%s1 + $0x20] sm:$0xf]
  %v31 = vld [vmem:[%s1 + $0x24] sm:$0xf]
  %v32 = vld [vmem:[%s1 + $0x28] sm:$0xf]
  %v33 = vld [vmem:[%s1 + $0x2c] sm:$0xf]
  %v34 = vld [vmem:[%s1 + $0x30] sm:$0xf]
  %v35 = vld [vmem:[%s1 + $0x34] sm:$0xf]
  %v36 = vld [vmem:[%s1 + $0x38] sm:$0xf]
  %v37 = vld [vmem:[%s1 + $0x3c] sm:$0xf]
  %v54 = vunpack.c.l.b16 %v22
  %v55 = vunpack.c.l.b16 %v23
  %v56 = vunpack.c.l.b16 %v24
  %v57 = vunpack.c.l.b16 %v25
  %v58 = vunpack.c.l.b16 %v26
  %v59 = vunpack.c.l.b16 %v27
  %v60 = vunpack.c.l.b16 %v28
  %v61 = vunpack.c.l.b16 %v29
  %v62 = vunpack.c.l.b16 %v30
  %v63 = vunpack.c.l.b16 %v31
  %v64 = vunpack.c.l.b16 %v32
  %v65 = vunpack.c.l.b16 %v33
  %v66 = vunpack.c.l.b16 %v34
  %v67 = vunpack.c.l.b16 %v35
  %v68 = vunpack.c.l.b16 %v36
  %v69 = vunpack.c.l.b16 %v37
  %v70 = vpack.c.b16 %v55, %v54
  %v71 = vpack.c.b16 %v57, %v56
  %v72 = vpack.c.b16 %v59, %v58
  %v73 = vpack.c.b16 %v61, %v60
  %v74 = vpack.c.b16 %v63, %v62
  %v75 = vpack.c.b16 %v65, %v64
  %v76 = vpack.c.b16 %v67, %v66
  %v77 = vpack.c.b16 %v69, %v68
  %86 = vmatprep.subr.bf16.mxu0 0
  %87 = vmatpush1.bf16.msra.mxu0 %v77
  %88 = vmatprep.subr.bf16.mxu0 0
  %89 = vmatpush1.bf16.msra.mxu0 %v76
  %90 = vmatprep.subr.bf16.mxu0 0
  %91 = vmatpush1.bf16.msra.mxu0 %v75
  %92 = vmatprep.subr.bf16.mxu0 0
  %93 = vmatpush1.bf16.msra.mxu0 %v74
  %94 = vmatprep.subr.bf16.mxu0 0
  %95 = vmatpush1.bf16.msra.mxu0 %v73
  %96 = vmatprep.subr.bf16.mxu0 0
  %97 = vmatpush1.bf16.msra.mxu0 %v72
  %98 = vmatprep.subr.bf16.mxu0 0
  %99 = vmatpush1.bf16.msra.mxu0 %v71
  %100 = vmatprep.subr.bf16.mxu0 0
  %101 = vmatpush1.bf16.msra.mxu0 %v70
  %102 = vmatprep.subr.bf16.mxu0 0
  %103 = vmatpush2.bf16.msra.mxu0 0
  %104 = vmatprep.subr.bf16.mxu0 0
  %105 = vmatpush2.bf16.msra.mxu0 0
  %106 = vmatprep.subr.bf16.mxu0 0
  %107 = vmatpush2.bf16.msra.mxu0 0
  %108 = vmatprep.subr.bf16.mxu0 0
  %109 = vmatpush2.bf16.msra.mxu0 0
  %110 = vmatprep.subr.bf16.mxu0 0
  %111 = vmatpush2.bf16.msra.mxu0 0
  %112 = vmatprep.subr.bf16.mxu0 0
  %113 = vmatpush2.bf16.msra.mxu0 0
  %114 = vmatprep.subr.bf16.mxu0 0
  %115 = vmatpush2.bf16.msra.mxu0 0
  %116 = vmatprep.subr.bf16.mxu0 0
  %117 = vmatpush2.bf16.msra.mxu0 0
  %118 = vmatprep.mubr.bf16.mxu0 0
  %119 = vmatmul.mubr.bf16.gmra.mxu0 %v21
  %v120 = vpop.f32.mrf.mxu0
  %v121 = vadd.f32 0.0, %v120
  %v122 = vpop.f32.mrf.mxu0
  %v123 = vpop.f32.mrf.mxu0
  %v124 = vpop.f32.mrf.mxu0
  %125 = vdwg.mxu0
  %v126 = vadd.f32 %v20, %v121
  %127 = vst [vmem:[#allocation2] sm:$0xff] %v126
  // Predicated region
  $region18: #{_forward.5} parent=0 // pred_check
    %p128 = pneg %p15
  $region19: #{_forward.5} parent=0 // pred_check_branch
    %130 = sbr.rel (%p128) target = $region21
  $region20: #{_forward.5} parent=0 // pred_region
    %v131 = vld [vmem:[#allocation2] sm:$0xff]
    %v132 = vld [vmem:[%s2] sm:$0x1]
    %v134 = vlaneseq
    %v135 = vshrl.u32 %v134, 7
    %v136 = vsub.s32 0, %v135
    %v137 = vrot.slane %v132, %v136
    %v139 = vadd.f32 %v131, %v137
    %140 = vst [vmem:[%s3] sm:$0xff] %v139
  $region21: #{_forward.5} parent=0 // pred_fallthru
    _
  // Predicated region
  $region22: #{_forward.5} parent=0 // pred_check
    _
  $region23: #{_forward.5} parent=0 // pred_check_branch
    %142 = sbr.rel (0) target = $region25
  $region24: #{_forward.5} parent=0 // pred_region
    _
  $region25: #{_forward.5} parent=0 // pred_fallthru
    _
  // Predicated region
  $region26: #{_forward.5} parent=0 // pred_check
    _
  $region27: #{_forward.5} parent=0 // pred_check_branch
    %144 = sbr.rel (0) target = $region29
  $region28: #{_forward.5} parent=0 // pred_region
    _
  $region29: #{_forward.5} parent=0 // pred_fallthru
    _

// kernel: _forward.3
$region0: #{_forward.3}
  #allocation0 [shape = 'u32[]', space=smem, size = 0x4, offset = 0x4, fixed_abs, tag = 'smem constant byte address 0x4 - core index']
  #allocation1 [shape = 'u32[144,128]{1,0:T(1,128)}', space=vmem, size = 0x12000, scoped, tag = 'internal scratch']
  #allocation2 [shape = 'f32[8,128]{1,0:T(8,128)}', space=vmem, size = 0x1000, scoped, tag = 'scratch operand']
  %s0 = inlined_call_operand.vmem [shape: bf16[8,1664], index: 0, kind: input, shape index: {}]
  %s1 = inlined_call_operand.vmem [shape: bf16[1664,128], index: 1, kind: input, shape index: {}]
  %s2 = inlined_call_operand.vmem [shape: f32[1,128], index: 2, kind: input, shape index: {}]
  %s3 = inlined_call_operand.vmem [shape: bf16[8,128], index: 3, kind: output, shape index: {}]
  %s4 = sld [smem:[#allocation0]]
  $region30: #{_forward.3} parent=0
    _
  %s6 = ssub.s32 1, %s4
  %s7 = scalar_select 0, %s6, %s4
  // Predicated region
  $region2: #{_forward.3} parent=0 // pred_check
    _
  $region3: #{_forward.3} parent=0 // pred_check_branch
    %9 = sbr.rel (0) target = $region5
  $region4: #{_forward.3} parent=0 // pred_region
    _
  $region5: #{_forward.3} parent=0 // pred_fallthru
    _
  // Predicated region
  $region6: #{_forward.3} parent=0 // pred_check
    _
  $region7: #{_forward.3} parent=0 // pred_check_branch
    %11 = sbr.rel (0) target = $region9
  $region8: #{_forward.3} parent=0 // pred_region
    _
  $region9: #{_forward.3} parent=0 // pred_fallthru
    _
  // Predicated region
  $region10: #{_forward.3} parent=0 // pred_check
    _
  $region11: #{_forward.3} parent=0 // pred_check_branch
    %13 = sbr.rel (0) target = $region13
  $region12: #{_forward.3} parent=0 // pred_region
    _
  $region13: #{_forward.3} parent=0 // pred_fallthru
    _
  %p15 = scmp.eq.s32.totalorder 0, 0
  // Predicated region
  $region14: #{_forward.3} parent=0 // pred_check
    %p16 = pneg %p15
  $region15: #{_forward.3} parent=0 // pred_check_branch
    %18 = sbr.rel (%p16) target = $region17
  $region16: #{_forward.3} parent=0 // pred_region
    %19 = vst [vmem:[#allocation2] sm:$0xff] 0.0
  $region17: #{_forward.3} parent=0 // pred_fallthru
    _
  %v20 = vld [vmem:[#allocation2] sm:$0xff]
  %v21 = vld [vmem:[%s0] sm:$0xff]
  %v22 = vld [vmem:[%s0 + $0x8] sm:$0xff]
  %v23 = vld [vmem:[%s0 + $0x10] sm:$0xff]
  %v24 = vld [vmem:[%s0 + $0x18] sm:$0xff]
  %v25 = vld [vmem:[%s0 + $0x20] sm:$0xff]
  %v26 = vld [vmem:[%s0 + $0x28] sm:$0xff]
  %v27 = vld [vmem:[%s0 + $0x30] sm:$0xf]
  %v28 = vld [vmem:[%s1] sm:$0xf]
  %v29 = vld [vmem:[%s1 + $0x4] sm:$0xf]
  %v30 = vld [vmem:[%s1 + $0x8] sm:$0xf]
  %v31 = vld [vmem:[%s1 + $0xc] sm:$0xf]
  %v32 = vld [vmem:[%s1 + $0x10] sm:$0xf]
  %v33 = vld [vmem:[%s1 + $0x14] sm:$0xf]
  %v34 = vld [vmem:[%s1 + $0x18] sm:$0xf]
  %v35 = vld [vmem:[%s1 + $0x1c] sm:$0xf]
  %v36 = vld [vmem:[%s1 + $0x20] sm:$0xf]
  %v37 = vld [vmem:[%s1 + $0x24] sm:$0xf]
  %v38 = vld [vmem:[%s1 + $0x28] sm:$0xf]
  %v39 = vld [vmem:[%s1 + $0x2c] sm:$0xf]
  %v40 = vld [vmem:[%s1 + $0x30] sm:$0xf]
  %v41 = vld [vmem:[%s1 + $0x34] sm:$0xf]
  %v42 = vld [vmem:[%s1 + $0x38] sm:$0xf]
  %v43 = vld [vmem:[%s1 + $0x3c] sm:$0xf]
  %v44 = vld [vmem:[%s1 + $0x40] sm:$0xf]
  %v45 = vld [vmem:[%s1 + $0x44] sm:$0xf]
  %v46 = vld [vmem:[%s1 + $0x48] sm:$0xf]
  %v47 = vld [vmem:[%s1 + $0x4c] sm:$0xf]
  %v48 = vld [vmem:[%s1 + $0x50] sm:$0xf]
  %v49 = vld [vmem:[%s1 + $0x54] sm:$0xf]
  %v50 = vld [vmem:[%s1 + $0x58] sm:$0xf]
  %v51 = vld [vmem:[%s1 + $0x5c] sm:$0xf]
  %v52 = vld [vmem:[%s1 + $0x60] sm:$0xf]
  %v53 = vld [vmem:[%s1 + $0x64] sm:$0xf]
  %v54 = vld [vmem:[%s1 + $0x68] sm:$0xf]
  %v55 = vld [vmem:[%s1 + $0x6c] sm:$0xf]
  %v56 = vld [vmem:[%s1 + $0x70] sm:$0xf]
  %v57 = vld [vmem:[%s1 + $0x74] sm:$0xf]
  %v58 = vld [vmem:[%s1 + $0x78] sm:$0xf]
  %v59 = vld [vmem:[%s1 + $0x7c] sm:$0xf]
  %v60 = vld [vmem:[%s1 + $0x80] sm:$0xf]
  %v61 = vld [vmem:[%s1 + $0x84] sm:$0xf]
  %v62 = vld [vmem:[%s1 + $0x88] sm:$0xf]
  %v63 = vld [vmem:[%s1 + $0x8c] sm:$0xf]
  %v64 = vld [vmem:[%s1 + $0x90] sm:$0xf]
  %v65 = vld [vmem:[%s1 + $0x94] sm:$0xf]
  %v66 = vld [vmem:[%s1 + $0x98] sm:$0xf]
  %v67 = vld [vmem:[%s1 + $0x9c] sm:$0xf]
  %v68 = vld [vmem:[%s1 + $0xa0] sm:$0xf]
  %v69 = vld [vmem:[%s1 + $0xa4] sm:$0xf]
  %v70 = vld [vmem:[%s1 + $0xa8] sm:$0xf]
  %v71 = vld [vmem:[%s1 + $0xac] sm:$0xf]
  %v72 = vld [vmem:[%s1 + $0xb0] sm:$0xf]
  %v73 = vld [vmem:[%s1 + $0xb4] sm:$0xf]
  %v74 = vld [vmem:[%s1 + $0xb8] sm:$0xf]
  %v75 = vld [vmem:[%s1 + $0xbc] sm:$0xf]
  %v76 = vld [vmem:[%s1 + $0xc0] sm:$0xf]
  %v77 = vld [vmem:[%s1 + $0xc4] sm:$0xf]
  %v78 = vld [vmem:[%s1 + $0xc8] sm:$0xf]
  %v79 = vld [vmem:[%s1 + $0xcc] sm:$0xf]
  %v80 = vld [vmem:[%s1 + $0xd0] sm:$0xf]
  %v81 = vld [vmem:[%s1 + $0xd4] sm:$0xf]
  %v82 = vld [vmem:[%s1 + $0xd8] sm:$0xf]
  %v83 = vld [vmem:[%s1 + $0xdc] sm:$0xf]
  %v84 = vld [vmem:[%s1 + $0xe0] sm:$0xf]
  %v85 = vld [vmem:[%s1 + $0xe4] sm:$0xf]
  %v86 = vld [vmem:[%s1 + $0xe8] sm:$0xf]
  %v87 = vld [vmem:[%s1 + $0xec] sm:$0xf]
  %v88 = vld [vmem:[%s1 + $0xf0] sm:$0xf]
  %v89 = vld [vmem:[%s1 + $0xf4] sm:$0xf]
  %v90 = vld [vmem:[%s1 + $0xf8] sm:$0xf]
  %v91 = vld [vmem:[%s1 + $0xfc] sm:$0xf]
  %v92 = vld [vmem:[%s1 + $0x100] sm:$0xf]
  %v93 = vld [vmem:[%s1 + $0x104] sm:$0xf]
  %v94 = vld [vmem:[%s1 + $0x108] sm:$0xf]
  %v95 = vld [vmem:[%s1 + $0x10c] sm:$0xf]
  %v96 = vld [vmem:[%s1 + $0x110] sm:$0xf]
  %v97 = vld [vmem:[%s1 + $0x114] sm:$0xf]
  %v98 = vld [vmem:[%s1 + $0x118] sm:$0xf]
  %v99 = vld [vmem:[%s1 + $0x11c] sm:$0xf]
  %v100 = vld [vmem:[%s1 + $0x120] sm:$0xf]
  %v101 = vld [vmem:[%s1 + $0x124] sm:$0xf]
  %v102 = vld [vmem:[%s1 + $0x128] sm:$0xf]
  %v103 = vld [vmem:[%s1 + $0x12c] sm:$0xf]
  %v104 = vld [vmem:[%s1 + $0x130] sm:$0xf]
  %v105 = vld [vmem:[%s1 + $0x134] sm:$0xf]
  %v106 = vld [vmem:[%s1 + $0x138] sm:$0xf]
  %v107 = vld [vmem:[%s1 + $0x13c] sm:$0xf]
  %v108 = vld [vmem:[%s1 + $0x140] sm:$0xf]
  %v109 = vld [vmem:[%s1 + $0x144] sm:$0xf]
  %v110 = vld [vmem:[%s1 + $0x148] sm:$0xf]
  %v111 = vld [vmem:[%s1 + $0x14c] sm:$0xf]
  %v112 = vld [vmem:[%s1 + $0x150] sm:$0xf]
  %v113 = vld [vmem:[%s1 + $0x154] sm:$0xf]
  %v114 = vld [vmem:[%s1 + $0x158] sm:$0xf]
  %v115 = vld [vmem:[%s1 + $0x15c] sm:$0xf]
  %v116 = vld [vmem:[%s1 + $0x160] sm:$0xf]
  %v117 = vld [vmem:[%s1 + $0x164] sm:$0xf]
  %v118 = vld [vmem:[%s1 + $0x168] sm:$0xf]
  %v119 = vld [vmem:[%s1 + $0x16c] sm:$0xf]
  %v120 = vld [vmem:[%s1 + $0x170] sm:$0xf]
  %v121 = vld [vmem:[%s1 + $0x174] sm:$0xf]
  %v122 = vld [vmem:[%s1 + $0x178] sm:$0xf]
  %v123 = vld [vmem:[%s1 + $0x17c] sm:$0xf]
  %v124 = vld [vmem:[%s1 + $0x180] sm:$0xf]
  %v125 = vld [vmem:[%s1 + $0x184] sm:$0xf]
  %v126 = vld [vmem:[%s1 + $0x188] sm:$0xf]
  %v127 = vld [vmem:[%s1 + $0x18c] sm:$0xf]
  %v128 = vld [vmem:[%s1 + $0x190] sm:$0xf]
  %v129 = vld [vmem:[%s1 + $0x194] sm:$0xf]
  %v130 = vld [vmem:[%s1 + $0x198] sm:$0xf]
  %v131 = vld [vmem:[%s1 + $0x19c] sm:$0xf]
  %v132 = vld [vmem:[%s1 + $0x1a0] sm:$0xf]
  %v133 = vld [vmem:[%s1 + $0x1a4] sm:$0xf]
  %v134 = vld [vmem:[%s1 + $0x1a8] sm:$0xf]
  %v135 = vld [vmem:[%s1 + $0x1ac] sm:$0xf]
  %v136 = vld [vmem:[%s1 + $0x1b0] sm:$0xf]
  %v137 = vld [vmem:[%s1 + $0x1b4] sm:$0xf]
  %v138 = vld [vmem:[%s1 + $0x1b8] sm:$0xf]
  %v139 = vld [vmem:[%s1 + $0x1bc] sm:$0xf]
  %v140 = vld [vmem:[%s1 + $0x1c0] sm:$0xf]
  %v141 = vld [vmem:[%s1 + $0x1c4] sm:$0xf]
  %v142 = vld [vmem:[%s1 + $0x1c8] sm:$0xf]
  %v143 = vld [vmem:[%s1 + $0x1cc] sm:$0xf]
  %v144 = vld [vmem:[%s1 + $0x1d0] sm:$0xf]
  %v145 = vld [vmem:[%s1 + $0x1d4] sm:$0xf]
  %v146 = vld [vmem:[%s1 + $0x1d8] sm:$0xf]
  %v147 = vld [vmem:[%s1 + $0x1dc] sm:$0xf]
  %v148 = vld [vmem:[%s1 + $0x1e0] sm:$0xf]
  %v149 = vld [vmem:[%s1 + $0x1e4] sm:$0xf]
  %v150 = vld [vmem:[%s1 + $0x1e8] sm:$0xf]
  %v151 = vld [vmem:[%s1 + $0x1ec] sm:$0xf]
  %v152 = vld [vmem:[%s1 + $0x1f0] sm:$0xf]
  %v153 = vld [vmem:[%s1 + $0x1f4] sm:$0xf]
  %v154 = vld [vmem:[%s1 + $0x1f8] sm:$0xf]
  %v155 = vld [vmem:[%s1 + $0x1fc] sm:$0xf]
  %v156 = vld [vmem:[%s1 + $0x200] sm:$0xf]
  %v157 = vld [vmem:[%s1 + $0x204] sm:$0xf]
  %v158 = vld [vmem:[%s1 + $0x208] sm:$0xf]
  %v159 = vld [vmem:[%s1 + $0x20c] sm:$0xf]
  %v160 = vld [vmem:[%s1 + $0x210] sm:$0xf]
  %v161 = vld [vmem:[%s1 + $0x214] sm:$0xf]
  %v162 = vld [vmem:[%s1 + $0x218] sm:$0xf]
  %v163 = vld [vmem:[%s1 + $0x21c] sm:$0xf]
  %v164 = vld [vmem:[%s1 + $0x220] sm:$0xf]
  %v165 = vld [vmem:[%s1 + $0x224] sm:$0xf]
  %v166 = vld [vmem:[%s1 + $0x228] sm:$0xf]
  %v167 = vld [vmem:[%s1 + $0x22c] sm:$0xf]
  %v168 = vld [vmem:[%s1 + $0x230] sm:$0xf]
  %v169 = vld [vmem:[%s1 + $0x234] sm:$0xf]
  %v170 = vld [vmem:[%s1 + $0x238] sm:$0xf]
  %v171 = vld [vmem:[%s1 + $0x23c] sm:$0xf]
  %v172 = vld [vmem:[%s1 + $0x240] sm:$0xf]
  %v173 = vld [vmem:[%s1 + $0x244] sm:$0xf]
  %v174 = vld [vmem:[%s1 + $0x248] sm:$0xf]
  %v175 = vld [vmem:[%s1 + $0x24c] sm:$0xf]
  %v176 = vld [vmem:[%s1 + $0x250] sm:$0xf]
  %v177 = vld [vmem:[%s1 + $0x254] sm:$0xf]
  %v178 = vld [vmem:[%s1 + $0x258] sm:$0xf]
  %v179 = vld [vmem:[%s1 + $0x25c] sm:$0xf]
  %v180 = vld [vmem:[%s1 + $0x260] sm:$0xf]
  %v181 = vld [vmem:[%s1 + $0x264] sm:$0xf]
  %v182 = vld [vmem:[%s1 + $0x268] sm:$0xf]
  %v183 = vld [vmem:[%s1 + $0x26c] sm:$0xf]
  %v184 = vld [vmem:[%s1 + $0x270] sm:$0xf]
  %v185 = vld [vmem:[%s1 + $0x274] sm:$0xf]
  %v186 = vld [vmem:[%s1 + $0x278] sm:$0xf]
  %v187 = vld [vmem:[%s1 + $0x27c] sm:$0xf]
  %v188 = vld [vmem:[%s1 + $0x280] sm:$0xf]
  %v189 = vld [vmem:[%s1 + $0x284] sm:$0xf]
  %v190 = vld [vmem:[%s1 + $0x288] sm:$0xf]
  %v191 = vld [vmem:[%s1 + $0x28c] sm:$0xf]
  %v192 = vld [vmem:[%s1 + $0x290] sm:$0xf]
  %v193 = vld [vmem:[%s1 + $0x294] sm:$0xf]
  %v194 = vld [vmem:[%s1 + $0x298] sm:$0xf]
  %v195 = vld [vmem:[%s1 + $0x29c] sm:$0xf]
  %v196 = vld [vmem:[%s1 + $0x2a0] sm:$0xf]
  %v197 = vld [vmem:[%s1 + $0x2a4] sm:$0xf]
  %v198 = vld [vmem:[%s1 + $0x2a8] sm:$0xf]
  %v199 = vld [vmem:[%s1 + $0x2ac] sm:$0xf]
  %v200 = vld [vmem:[%s1 + $0x2b0] sm:$0xf]
  %v201 = vld [vmem:[%s1 + $0x2b4] sm:$0xf]
  %v202 = vld [vmem:[%s1 + $0x2b8] sm:$0xf]
  %v203 = vld [vmem:[%s1 + $0x2bc] sm:$0xf]
  %v204 = vld [vmem:[%s1 + $0x2c0] sm:$0xf]
  %v205 = vld [vmem:[%s1 + $0x2c4] sm:$0xf]
  %v206 = vld [vmem:[%s1 + $0x2c8] sm:$0xf]
  %v207 = vld [vmem:[%s1 + $0x2cc] sm:$0xf]
  %v208 = vld [vmem:[%s1 + $0x2d0] sm:$0xf]
  %v209 = vld [vmem:[%s1 + $0x2d4] sm:$0xf]
  %v210 = vld [vmem:[%s1 + $0x2d8] sm:$0xf]
  %v211 = vld [vmem:[%s1 + $0x2dc] sm:$0xf]
  %v212 = vld [vmem:[%s1 + $0x2e0] sm:$0xf]
  %v213 = vld [vmem:[%s1 + $0x2e4] sm:$0xf]
  %v214 = vld [vmem:[%s1 + $0x2e8] sm:$0xf]
  %v215 = vld [vmem:[%s1 + $0x2ec] sm:$0xf]
  %v216 = vld [vmem:[%s1 + $0x2f0] sm:$0xf]
  %v217 = vld [vmem:[%s1 + $0x2f4] sm:$0xf]
  %v218 = vld [vmem:[%s1 + $0x2f8] sm:$0xf]
  %v219 = vld [vmem:[%s1 + $0x2fc] sm:$0xf]
  %v220 = vld [vmem:[%s1 + $0x300] sm:$0xf]
  %v221 = vld [vmem:[%s1 + $0x304] sm:$0xf]
  %v222 = vld [vmem:[%s1 + $0x308] sm:$0xf]
  %v223 = vld [vmem:[%s1 + $0x30c] sm:$0xf]
  %v224 = vld [vmem:[%s1 + $0x310] sm:$0xf]
  %v225 = vld [vmem:[%s1 + $0x314] sm:$0xf]
  %v226 = vld [vmem:[%s1 + $0x318] sm:$0xf]
  %v227 = vld [vmem:[%s1 + $0x31c] sm:$0xf]
  %v228 = vld [vmem:[%s1 + $0x320] sm:$0xf]
  %v229 = vld [vmem:[%s1 + $0x324] sm:$0xf]
  %v230 = vld [vmem:[%s1 + $0x328] sm:$0xf]
  %v231 = vld [vmem:[%s1 + $0x32c] sm:$0xf]
  %v232 = vld [vmem:[%s1 + $0x330] sm:$0xf]
  %v233 = vld [vmem:[%s1 + $0x334] sm:$0xf]
  %v234 = vld [vmem:[%s1 + $0x338] sm:$0xf]
  %v235 = vld [vmem:[%s1 + $0x33c] sm:$0xf]
  %v243 = vunpack.c.l.b16 %v21
  %v244 = vunpack.c.h.b16 %v21
  %v245 = vunpack.c.l.b16 %v22
  %v246 = vunpack.c.h.b16 %v22
  %v247 = vunpack.c.l.b16 %v23
  %v248 = vunpack.c.h.b16 %v23
  %v249 = vunpack.c.l.b16 %v24
  %v250 = vunpack.c.h.b16 %v24
  %v251 = vunpack.c.l.b16 %v25
  %v252 = vunpack.c.h.b16 %v25
  %v253 = vunpack.c.l.b16 %v26
  %v254 = vunpack.c.h.b16 %v26
  %v255 = vunpack.c.l.b16 %v27
  %v256 = vpack.c.b16 %v243, %v243
  %v257 = vpack.c.b16 %v244, %v244
  %v258 = vpack.c.b16 %v245, %v245
  %v259 = vpack.c.b16 %v246, %v246
  %v260 = vpack.c.b16 %v247, %v247
  %v261 = vpack.c.b16 %v248, %v248
  %v262 = vpack.c.b16 %v249, %v249
  %v263 = vpack.c.b16 %v250, %v250
  %v264 = vpack.c.b16 %v251, %v251
  %v265 = vpack.c.b16 %v252, %v252
  %v266 = vpack.c.b16 %v253, %v253
  %v267 = vpack.c.b16 %v254, %v254
  %v268 = vpack.c.b16 %v255, %v255
  %v490 = vunpack.c.l.b16 %v28
  %v491 = vunpack.c.l.b16 %v29
  %v492 = vunpack.c.l.b16 %v30
  %v493 = vunpack.c.l.b16 %v31
  %v494 = vunpack.c.l.b16 %v32
  %v495 = vunpack.c.l.b16 %v33
  %v496 = vunpack.c.l.b16 %v34
  %v497 = vunpack.c.l.b16 %v35
  %v498 = vunpack.c.l.b16 %v36
  %v499 = vunpack.c.l.b16 %v37
  %v500 = vunpack.c.l.b16 %v38
  %v501 = vunpack.c.l.b16 %v39
  %v502 = vunpack.c.l.b16 %v40
  %v503 = vunpack.c.l.b16 %v41
  %v504 = vunpack.c.l.b16 %v42
  %v505 = vunpack.c.l.b16 %v43
  %v506 = vunpack.c.l.b16 %v44
  %v507 = vunpack.c.l.b16 %v45
  %v508 = vunpack.c.l.b16 %v46
  %v509 = vunpack.c.l.b16 %v47
  %v510 = vunpack.c.l.b16 %v48
  %v511 = vunpack.c.l.b16 %v49
  %v512 = vunpack.c.l.b16 %v50
  %v513 = vunpack.c.l.b16 %v51
  %v514 = vunpack.c.l.b16 %v52
  %v515 = vunpack.c.l.b16 %v53
  %v516 = vunpack.c.l.b16 %v54
  %v517 = vunpack.c.l.b16 %v55
  %v518 = vunpack.c.l.b16 %v56
  %v519 = vunpack.c.l.b16 %v57
  %v520 = vunpack.c.l.b16 %v58
  %v521 = vunpack.c.l.b16 %v59
  %v522 = vunpack.c.l.b16 %v60
  %v523 = vunpack.c.l.b16 %v61
  %v524 = vunpack.c.l.b16 %v62
  %v525 = vunpack.c.l.b16 %v63
  %v526 = vunpack.c.l.b16 %v64
  %v527 = vunpack.c.l.b16 %v65
  %v528 = vunpack.c.l.b16 %v66
  %v529 = vunpack.c.l.b16 %v67
  %v530 = vunpack.c.l.b16 %v68
  %v531 = vunpack.c.l.b16 %v69
  %v532 = vunpack.c.l.b16 %v70
  %v533 = vunpack.c.l.b16 %v71
  %v534 = vunpack.c.l.b16 %v72
  %v535 = vunpack.c.l.b16 %v73
  %v536 = vunpack.c.l.b16 %v74
  %v537 = vunpack.c.l.b16 %v75
  %v538 = vunpack.c.l.b16 %v76
  %v539 = vunpack.c.l.b16 %v77
  %v540 = vunpack.c.l.b16 %v78
  %v541 = vunpack.c.l.b16 %v79
  %v542 = vunpack.c.l.b16 %v80
  %v543 = vunpack.c.l.b16 %v81
  %v544 = vunpack.c.l.b16 %v82
  %v545 = vunpack.c.l.b16 %v83
  %v546 = vunpack.c.l.b16 %v84
  %v547 = vunpack.c.l.b16 %v85
  %v548 = vunpack.c.l.b16 %v86
  %v549 = vunpack.c.l.b16 %v87
  %v550 = vunpack.c.l.b16 %v88
  %v551 = vunpack.c.l.b16 %v89
  %v552 = vunpack.c.l.b16 %v90
  %v553 = vunpack.c.l.b16 %v91
  %v554 = vunpack.c.l.b16 %v92
  %v555 = vunpack.c.l.b16 %v93
  %v556 = vunpack.c.l.b16 %v94
  %v557 = vunpack.c.l.b16 %v95
  %v558 = vunpack.c.l.b16 %v96
  %v559 = vunpack.c.l.b16 %v97
  %v560 = vunpack.c.l.b16 %v98
  %v561 = vunpack.c.l.b16 %v99
  %v562 = vunpack.c.l.b16 %v100
  %v563 = vunpack.c.l.b16 %v101
  %v564 = vunpack.c.l.b16 %v102
  %v565 = vunpack.c.l.b16 %v103
  %v566 = vunpack.c.l.b16 %v104
  %v567 = vunpack.c.l.b16 %v105
  %v568 = vunpack.c.l.b16 %v106
  %v569 = vunpack.c.l.b16 %v107
  %v570 = vunpack.c.l.b16 %v108
  %v571 = vunpack.c.l.b16 %v109
  %v572 = vunpack.c.l.b16 %v110
  %v573 = vunpack.c.l.b16 %v111
  %v574 = vunpack.c.l.b16 %v112
  %v575 = vunpack.c.l.b16 %v113
  %v576 = vunpack.c.l.b16 %v114
  %v577 = vunpack.c.l.b16 %v115
  %v578 = vunpack.c.l.b16 %v116
  %v579 = vunpack.c.l.b16 %v117
  %v580 = vunpack.c.l.b16 %v118
  %v581 = vunpack.c.l.b16 %v119
  %v582 = vunpack.c.l.b16 %v120
  %v583 = vunpack.c.l.b16 %v121
  %v584 = vunpack.c.l.b16 %v122
  %v585 = vunpack.c.l.b16 %v123
  %v586 = vunpack.c.l.b16 %v124
  %v587 = vunpack.c.l.b16 %v125
  %v588 = vunpack.c.l.b16 %v126
  %v589 = vunpack.c.l.b16 %v127
  %v590 = vunpack.c.l.b16 %v128
  %v591 = vunpack.c.l.b16 %v129
  %v592 = vunpack.c.l.b16 %v130
  %v593 = vunpack.c.l.b16 %v131
  %v594 = vunpack.c.l.b16 %v132
  %v595 = vunpack.c.l.b16 %v133
  %v596 = vunpack.c.l.b16 %v134
  %v597 = vunpack.c.l.b16 %v135
  %v598 = vunpack.c.l.b16 %v136
  %v599 = vunpack.c.l.b16 %v137
  %v600 = vunpack.c.l.b16 %v138
  %v601 = vunpack.c.l.b16 %v139
  %v602 = vunpack.c.l.b16 %v140
  %v603 = vunpack.c.l.b16 %v141
  %v604 = vunpack.c.l.b16 %v142
  %v605 = vunpack.c.l.b16 %v143
  %v606 = vunpack.c.l.b16 %v144
  %v607 = vunpack.c.l.b16 %v145
  %v608 = vunpack.c.l.b16 %v146
  %v609 = vunpack.c.l.b16 %v147
  %v610 = vunpack.c.l.b16 %v148
  %v611 = vunpack.c.l.b16 %v149
  %v612 = vunpack.c.l.b16 %v150
  %v613 = vunpack.c.l.b16 %v151
  %v614 = vunpack.c.l.b16 %v152
  %v615 = vunpack.c.l.b16 %v153
  %v616 = vunpack.c.l.b16 %v154
  %v617 = vunpack.c.l.b16 %v155
  %v618 = vunpack.c.l.b16 %v156
  %v619 = vunpack.c.l.b16 %v157
  %v620 = vunpack.c.l.b16 %v158
  %v621 = vunpack.c.l.b16 %v159
  %v622 = vunpack.c.l.b16 %v160
  %v623 = vunpack.c.l.b16 %v161
  %v624 = vunpack.c.l.b16 %v162
  %v625 = vunpack.c.l.b16 %v163
  %v626 = vunpack.c.l.b16 %v164
  %v627 = vunpack.c.l.b16 %v165
  %v628 = vunpack.c.l.b16 %v166
  %v629 = vunpack.c.l.b16 %v167
  %v630 = vunpack.c.l.b16 %v168
  %v631 = vunpack.c.l.b16 %v169
  %v632 = vunpack.c.l.b16 %v170
  %v633 = vunpack.c.l.b16 %v171
  %v634 = vunpack.c.l.b16 %v172
  %v635 = vunpack.c.l.b16 %v173
  %v636 = vunpack.c.l.b16 %v174
  %v637 = vunpack.c.l.b16 %v175
  %v638 = vunpack.c.l.b16 %v176
  %v639 = vunpack.c.l.b16 %v177
  %v640 = vunpack.c.l.b16 %v178
  %v641 = vunpack.c.l.b16 %v179
  %v642 = vunpack.c.l.b16 %v180
  %v643 = vunpack.c.l.b16 %v181
  %v644 = vunpack.c.l.b16 %v182
  %v645 = vunpack.c.l.b16 %v183
  %v646 = vunpack.c.l.b16 %v184
  %v647 = vunpack.c.l.b16 %v185
  %v648 = vunpack.c.l.b16 %v186
  %v649 = vunpack.c.l.b16 %v187
  %v650 = vunpack.c.l.b16 %v188
  %v651 = vunpack.c.l.b16 %v189
  %v652 = vunpack.c.l.b16 %v190
  %v653 = vunpack.c.l.b16 %v191
  %v654 = vunpack.c.l.b16 %v192
  %v655 = vunpack.c.l.b16 %v193
  %v656 = vunpack.c.l.b16 %v194
  %v657 = vunpack.c.l.b16 %v195
  %v658 = vunpack.c.l.b16 %v196
  %v659 = vunpack.c.l.b16 %v197
  %v660 = vunpack.c.l.b16 %v198
  %v661 = vunpack.c.l.b16 %v199
  %v662 = vunpack.c.l.b16 %v200
  %v663 = vunpack.c.l.b16 %v201
  %v664 = vunpack.c.l.b16 %v202
  %v665 = vunpack.c.l.b16 %v203
  %v666 = vunpack.c.l.b16 %v204
  %v667 = vunpack.c.l.b16 %v205
  %v668 = vunpack.c.l.b16 %v206
  %v669 = vunpack.c.l.b16 %v207
  %v670 = vunpack.c.l.b16 %v208
  %v671 = vunpack.c.l.b16 %v209
  %v672 = vunpack.c.l.b16 %v210
  %v673 = vunpack.c.l.b16 %v211
  %v674 = vunpack.c.l.b16 %v212
  %v675 = vunpack.c.l.b16 %v213
  %v676 = vunpack.c.l.b16 %v214
  %v677 = vunpack.c.l.b16 %v215
  %v678 = vunpack.c.l.b16 %v216
  %v679 = vunpack.c.l.b16 %v217
  %v680 = vunpack.c.l.b16 %v218
  %v681 = vunpack.c.l.b16 %v219
  %v682 = vunpack.c.l.b16 %v220
  %v683 = vunpack.c.l.b16 %v221
  %v684 = vunpack.c.l.b16 %v222
  %v685 = vunpack.c.l.b16 %v223
  %v686 = vunpack.c.l.b16 %v224
  %v687 = vunpack.c.l.b16 %v225
  %v688 = vunpack.c.l.b16 %v226
  %v689 = vunpack.c.l.b16 %v227
  %v690 = vunpack.c.l.b16 %v228
  %v691 = vunpack.c.l.b16 %v229
  %v692 = vunpack.c.l.b16 %v230
  %v693 = vunpack.c.l.b16 %v231
  %v694 = vunpack.c.l.b16 %v232
  %v695 = vunpack.c.l.b16 %v233
  %v696 = vunpack.c.l.b16 %v234
  %v697 = vunpack.c.l.b16 %v235
  %v698 = vpack.c.b16 %v491, %v490
  %v699 = vpack.c.b16 %v493, %v492
  %v700 = vpack.c.b16 %v495, %v494
  %v701 = vpack.c.b16 %v497, %v496
  %v702 = vpack.c.b16 %v499, %v498
  %v703 = vpack.c.b16 %v501, %v500
  %v704 = vpack.c.b16 %v503, %v502
  %v705 = vpack.c.b16 %v505, %v504
  %v706 = vpack.c.b16 %v507, %v506
  %v707 = vpack.c.b16 %v509, %v508
  %v708 = vpack.c.b16 %v511, %v510
  %v709 = vpack.c.b16 %v513, %v512
  %v710 = vpack.c.b16 %v515, %v514
  %v711 = vpack.c.b16 %v517, %v516
  %v712 = vpack.c.b16 %v519, %v518
  %v713 = vpack.c.b16 %v521, %v520
  %v714 = vpack.c.b16 %v523, %v522
  %v715 = vpack.c.b16 %v525, %v524
  %v716 = vpack.c.b16 %v527, %v526
  %v717 = vpack.c.b16 %v529, %v528
  %v718 = vpack.c.b16 %v531, %v530
  %v719 = vpack.c.b16 %v533, %v532
  %v720 = vpack.c.b16 %v535, %v534
  %v721 = vpack.c.b16 %v537, %v536
  %v722 = vpack.c.b16 %v539, %v538
  %v723 = vpack.c.b16 %v541, %v540
  %v724 = vpack.c.b16 %v543, %v542
  %v725 = vpack.c.b16 %v545, %v544
  %v726 = vpack.c.b16 %v547, %v546
  %v727 = vpack.c.b16 %v549, %v548
  %v728 = vpack.c.b16 %v551, %v550
  %v729 = vpack.c.b16 %v553, %v552
  %v730 = vpack.c.b16 %v555, %v554
  %v731 = vpack.c.b16 %v557, %v556
  %v732 = vpack.c.b16 %v559, %v558
  %v733 = vpack.c.b16 %v561, %v560
  %v734 = vpack.c.b16 %v563, %v562
  %v735 = vpack.c.b16 %v565, %v564
  %v736 = vpack.c.b16 %v567, %v566
  %v737 = vpack.c.b16 %v569, %v568
  %v738 = vpack.c.b16 %v571, %v570
  %v739 = vpack.c.b16 %v573, %v572
  %v740 = vpack.c.b16 %v575, %v574
  %v741 = vpack.c.b16 %v577, %v576
  %v742 = vpack.c.b16 %v579, %v578
  %v743 = vpack.c.b16 %v581, %v580
  %v744 = vpack.c.b16 %v583, %v582
  %v745 = vpack.c.b16 %v585, %v584
  %v746 = vpack.c.b16 %v587, %v586
  %v747 = vpack.c.b16 %v589, %v588
  %v748 = vpack.c.b16 %v591, %v590
  %v749 = vpack.c.b16 %v593, %v592
  %v750 = vpack.c.b16 %v595, %v594
  %v751 = vpack.c.b16 %v597, %v596
  %v752 = vpack.c.b16 %v599, %v598
  %v753 = vpack.c.b16 %v601, %v600
  %v754 = vpack.c.b16 %v603, %v602
  %v755 = vpack.c.b16 %v605, %v604
  %v756 = vpack.c.b16 %v607, %v606
  %v757 = vpack.c.b16 %v609, %v608
  %v758 = vpack.c.b16 %v611, %v610
  %v759 = vpack.c.b16 %v613, %v612
  %v760 = vpack.c.b16 %v615, %v614
  %v761 = vpack.c.b16 %v617, %v616
  %v762 = vpack.c.b16 %v619, %v618
  %v763 = vpack.c.b16 %v621, %v620
  %v764 = vpack.c.b16 %v623, %v622
  %v765 = vpack.c.b16 %v625, %v624
  %v766 = vpack.c.b16 %v627, %v626
  %v767 = vpack.c.b16 %v629, %v628
  %v768 = vpack.c.b16 %v631, %v630
  %v769 = vpack.c.b16 %v633, %v632
  %v770 = vpack.c.b16 %v635, %v634
  %v771 = vpack.c.b16 %v637, %v636
  %v772 = vpack.c.b16 %v639, %v638
  %v773 = vpack.c.b16 %v641, %v640
  %v774 = vpack.c.b16 %v643, %v642
  %v775 = vpack.c.b16 %v645, %v644
  %v776 = vpack.c.b16 %v647, %v646
  %v777 = vpack.c.b16 %v649, %v648
  %v778 = vpack.c.b16 %v651, %v650
  %v779 = vpack.c.b16 %v653, %v652
  %v780 = vpack.c.b16 %v655, %v654
  %v781 = vpack.c.b16 %v657, %v656
  %v782 = vpack.c.b16 %v659, %v658
  %v783 = vpack.c.b16 %v661, %v660
  %v784 = vpack.c.b16 %v663, %v662
  %v785 = vpack.c.b16 %v665, %v664
  %v786 = vpack.c.b16 %v667, %v666
  %v787 = vpack.c.b16 %v669, %v668
  %v788 = vpack.c.b16 %v671, %v670
  %v789 = vpack.c.b16 %v673, %v672
  %v790 = vpack.c.b16 %v675, %v674
  %v791 = vpack.c.b16 %v677, %v676
  %v792 = vpack.c.b16 %v679, %v678
  %v793 = vpack.c.b16 %v681, %v680
  %v794 = vpack.c.b16 %v683, %v682
  %v795 = vpack.c.b16 %v685, %v684
  %v796 = vpack.c.b16 %v687, %v686
  %v797 = vpack.c.b16 %v689, %v688
  %v798 = vpack.c.b16 %v691, %v690
  %v799 = vpack.c.b16 %v693, %v692
  %v800 = vpack.c.b16 %v695, %v694
  %v801 = vpack.c.b16 %v697, %v696
  %906 = vmatprep.subr.bf16.mxu0 0
  %907 = vmatpush1.bf16.msra.mxu0 %v705
  %908 = vmatprep.subr.bf16.mxu0 0
  %909 = vmatpush1.bf16.msra.mxu0 %v704
  %910 = vmatprep.subr.bf16.mxu0 0
  %911 = vmatpush1.bf16.msra.mxu0 %v703
  %912 = vmatprep.subr.bf16.mxu0 0
  %913 = vmatpush1.bf16.msra.mxu0 %v702
  %914 = vmatprep.subr.bf16.mxu0 0
  %915 = vmatpush1.bf16.msra.mxu0 %v701
  %916 = vmatprep.subr.bf16.mxu0 0
  %917 = vmatpush1.bf16.msra.mxu0 %v700
  %918 = vmatprep.subr.bf16.mxu0 0
  %919 = vmatpush1.bf16.msra.mxu0 %v699
  %920 = vmatprep.subr.bf16.mxu0 0
  %921 = vmatpush1.bf16.msra.mxu0 %v698
  %922 = vmatprep.subr.bf16.mxu0 0
  %923 = vmatpush2.bf16.msra.mxu0 %v713
  %924 = vmatprep.subr.bf16.mxu0 0
  %925 = vmatpush2.bf16.msra.mxu0 %v712
  %926 = vmatprep.subr.bf16.mxu0 0
  %927 = vmatpush2.bf16.msra.mxu0 %v711
  %928 = vmatprep.subr.bf16.mxu0 0
  %929 = vmatpush2.bf16.msra.mxu0 %v710
  %930 = vmatprep.subr.bf16.mxu0 0
  %931 = vmatpush2.bf16.msra.mxu0 %v709
  %932 = vmatprep.subr.bf16.mxu0 0
  %933 = vmatpush2.bf16.msra.mxu0 %v708
  %934 = vmatprep.subr.bf16.mxu0 0
  %935 = vmatpush2.bf16.msra.mxu0 %v707
  %936 = vmatprep.subr.bf16.mxu0 0
  %937 = vmatpush2.bf16.msra.mxu0 %v706
  %938 = vmatprep.mubr.bf16.mxu0 %v257
  %939 = vmatmul.mubr.bf16.gmra.mxu0 %v256
  %v940 = vpop.f32.mrf.mxu0
  %v941 = vadd.f32 0.0, %v940
  %v942 = vpop.f32.mrf.mxu0
  %v943 = vpop.f32.mrf.mxu0
  %v944 = vpop.f32.mrf.mxu0
  %945 = vdwg.mxu0
  %946 = vmatprep.subr.bf16.mxu0 0
  %947 = vmatpush1.bf16.msra.mxu0 %v721
  %948 = vmatprep.subr.bf16.mxu0 0
  %949 = vmatpush1.bf16.msra.mxu0 %v720
  %950 = vmatprep.subr.bf16.mxu0 0
  %951 = vmatpush1.bf16.msra.mxu0 %v719
  %952 = vmatprep.subr.bf16.mxu0 0
  %953 = vmatpush1.bf16.msra.mxu0 %v718
  %954 = vmatprep.subr.bf16.mxu0 0
  %955 = vmatpush1.bf16.msra.mxu0 %v717
  %956 = vmatprep.subr.bf16.mxu0 0
  %957 = vmatpush1.bf16.msra.mxu0 %v716
  %958 = vmatprep.subr.bf16.mxu0 0
  %959 = vmatpush1.bf16.msra.mxu0 %v715
  %960 = vmatprep.subr.bf16.mxu0 0
  %961 = vmatpush1.bf16.msra.mxu0 %v714
  %962 = vmatprep.subr.bf16.mxu0 0
  %963 = vmatpush2.bf16.msra.mxu0 %v729
  %964 = vmatprep.subr.bf16.mxu0 0
  %965 = vmatpush2.bf16.msra.mxu0 %v728
  %966 = vmatprep.subr.bf16.mxu0 0
  %967 = vmatpush2.bf16.msra.mxu0 %v727
  %968 = vmatprep.subr.bf16.mxu0 0
  %969 = vmatpush2.bf16.msra.mxu0 %v726
  %970 = vmatprep.subr.bf16.mxu0 0
  %971 = vmatpush2.bf16.msra.mxu0 %v725
  %972 = vmatprep.subr.bf16.mxu0 0
  %973 = vmatpush2.bf16.msra.mxu0 %v724
  %974 = vmatprep.subr.bf16.mxu0 0
  %975 = vmatpush2.bf16.msra.mxu0 %v723
  %976 = vmatprep.subr.bf16.mxu0 0
  %977 = vmatpush2.bf16.msra.mxu0 %v722
  %978 = vmatprep.mubr.bf16.mxu0 %v259
  %979 = vmatmul.mubr.bf16.gmra.mxu0 %v258
  %v980 = vpop.f32.mrf.mxu0
  %v981 = vadd.f32 %v941, %v980
  %v982 = vpop.f32.mrf.mxu0
  %v983 = vpop.f32.mrf.mxu0
  %v984 = vpop.f32.mrf.mxu0
  %985 = vdwg.mxu0
  %986 = vmatprep.subr.bf16.mxu0 0
  %987 = vmatpush1.bf16.msra.mxu0 %v737
  %988 = vmatprep.subr.bf16.mxu0 0
  %989 = vmatpush1.bf16.msra.mxu0 %v736
  %990 = vmatprep.subr.bf16.mxu0 0
  %991 = vmatpush1.bf16.msra.mxu0 %v735
  %992 = vmatprep.subr.bf16.mxu0 0
  %993 = vmatpush1.bf16.msra.mxu0 %v734
  %994 = vmatprep.subr.bf16.mxu0 0
  %995 = vmatpush1.bf16.msra.mxu0 %v733
  %996 = vmatprep.subr.bf16.mxu0 0
  %997 = vmatpush1.bf16.msra.mxu0 %v732
  %998 = vmatprep.subr.bf16.mxu0 0
  %999 = vmatpush1.bf16.msra.mxu0 %v731
  %1000 = vmatprep.subr.bf16.mxu0 0
  %1001 = vmatpush1.bf16.msra.mxu0 %v730
  %1002 = vmatprep.subr.bf16.mxu0 0
  %1003 = vmatpush2.bf16.msra.mxu0 %v745
  %1004 = vmatprep.subr.bf16.mxu0 0
  %1005 = vmatpush2.bf16.msra.mxu0 %v744
  %1006 = vmatprep.subr.bf16.mxu0 0
  %1007 = vmatpush2.bf16.msra.mxu0 %v743
  %1008 = vmatprep.subr.bf16.mxu0 0
  %1009 = vmatpush2.bf16.msra.mxu0 %v742
  %1010 = vmatprep.subr.bf16.mxu0 0
  %1011 = vmatpush2.bf16.msra.mxu0 %v741
  %1012 = vmatprep.subr.bf16.mxu0 0
  %1013 = vmatpush2.bf16.msra.mxu0 %v740
  %1014 = vmatprep.subr.bf16.mxu0 0
  %1015 = vmatpush2.bf16.msra.mxu0 %v739
  %1016 = vmatprep.subr.bf16.mxu0 0
  %1017 = vmatpush2.bf16.msra.mxu0 %v738
  %1018 = vmatprep.mubr.bf16.mxu0 %v261
  %1019 = vmatmul.mubr.bf16.gmra.mxu0 %v260
  %v1020 = vpop.f32.mrf.mxu0
  %v1021 = vadd.f32 %v981, %v1020
  %v1022 = vpop.f32.mrf.mxu0
  %v1023 = vpop.f32.mrf.mxu0
  %v1024 = vpop.f32.mrf.mxu0
  %1025 = vdwg.mxu0
  %1026 = vmatprep.subr.bf16.mxu0 0
  %1027 = vmatpush1.bf16.msra.mxu0 %v753
  %1028 = vmatprep.subr.bf16.mxu0 0
  %1029 = vmatpush1.bf16.msra.mxu0 %v752
  %1030 = vmatprep.subr.bf16.mxu0 0
  %1031 = vmatpush1.bf16.msra.mxu0 %v751
  %1032 = vmatprep.subr.bf16.mxu0 0
  %1033 = vmatpush1.bf16.msra.mxu0 %v750
  %1034 = vmatprep.subr.bf16.mxu0 0
  %1035 = vmatpush1.bf16.msra.mxu0 %v749
  %1036 = vmatprep.subr.bf16.mxu0 0
  %1037 = vmatpush1.bf16.msra.mxu0 %v748
  %1038 = vmatprep.subr.bf16.mxu0 0
  %1039 = vmatpush1.bf16.msra.mxu0 %v747
  %1040 = vmatprep.subr.bf16.mxu0 0
  %1041 = vmatpush1.bf16.msra.mxu0 %v746
  %1042 = vmatprep.subr.bf16.mxu0 0
  %1043 = vmatpush2.bf16.msra.mxu0 %v761
  %1044 = vmatprep.subr.bf16.mxu0 0
  %1045 = vmatpush2.bf16.msra.mxu0 %v760
  %1046 = vmatprep.subr.bf16.mxu0 0
  %1047 = vmatpush2.bf16.msra.mxu0 %v759
  %1048 = vmatprep.subr.bf16.mxu0 0
  %1049 = vmatpush2.bf16.msra.mxu0 %v758
  %1050 = vmatprep.subr.bf16.mxu0 0
  %1051 = vmatpush2.bf16.msra.mxu0 %v757
  %1052 = vmatprep.subr.bf16.mxu0 0
  %1053 = vmatpush2.bf16.msra.mxu0 %v756
  %1054 = vmatprep.subr.bf16.mxu0 0
  %1055 = vmatpush2.bf16.msra.mxu0 %v755
  %1056 = vmatprep.subr.bf16.mxu0 0
  %1057 = vmatpush2.bf16.msra.mxu0 %v754
  %1058 = vmatprep.mubr.bf16.mxu0 %v263
  %1059 = vmatmul.mubr.bf16.gmra.mxu0 %v262
  %v1060 = vpop.f32.mrf.mxu0
  %v1061 = vadd.f32 %v1021, %v1060
  %v1062 = vpop.f32.mrf.mxu0
  %v1063 = vpop.f32.mrf.mxu0
  %v1064 = vpop.f32.mrf.mxu0
  %1065 = vdwg.mxu0
  %1066 = vmatprep.subr.bf16.mxu0 0
  %1067 = vmatpush1.bf16.msra.mxu0 %v769
  %1068 = vmatprep.subr.bf16.mxu0 0
  %1069 = vmatpush1.bf16.msra.mxu0 %v768
  %1070 = vmatprep.subr.bf16.mxu0 0
  %1071 = vmatpush1.bf16.msra.mxu0 %v767
  %1072 = vmatprep.subr.bf16.mxu0 0
  %1073 = vmatpush1.bf16.msra.mxu0 %v766
  %1074 = vmatprep.subr.bf16.mxu0 0
  %1075 = vmatpush1.bf16.msra.mxu0 %v765
  %1076 = vmatprep.subr.bf16.mxu0 0
  %1077 = vmatpush1.bf16.msra.mxu0 %v764
  %1078 = vmatprep.subr.bf16.mxu0 0
  %1079 = vmatpush1.bf16.msra.mxu0 %v763
  %1080 = vmatprep.subr.bf16.mxu0 0
  %1081 = vmatpush1.bf16.msra.mxu0 %v762
  %1082 = vmatprep.subr.bf16.mxu0 0
  %1083 = vmatpush2.bf16.msra.mxu0 %v777
  %1084 = vmatprep.subr.bf16.mxu0 0
  %1085 = vmatpush2.bf16.msra.mxu0 %v776
  %1086 = vmatprep.subr.bf16.mxu0 0
  %1087 = vmatpush2.bf16.msra.mxu0 %v775
  %1088 = vmatprep.subr.bf16.mxu0 0
  %1089 = vmatpush2.bf16.msra.mxu0 %v774
  %1090 = vmatprep.subr.bf16.mxu0 0
  %1091 = vmatpush2.bf16.msra.mxu0 %v773
  %1092 = vmatprep.subr.bf16.mxu0 0
  %1093 = vmatpush2.bf16.msra.mxu0 %v772
  %1094 = vmatprep.subr.bf16.mxu0 0
  %1095 = vmatpush2.bf16.msra.mxu0 %v771
  %1096 = vmatprep.subr.bf16.mxu0 0
  %1097 = vmatpush2.bf16.msra.mxu0 %v770
  %1098 = vmatprep.mubr.bf16.mxu0 %v265
  %1099 = vmatmul.mubr.bf16.gmra.mxu0 %v264
  %v1100 = vpop.f32.mrf.mxu0
  %v1101 = vadd.f32 %v1061, %v1100
  %v1102 = vpop.f32.mrf.mxu0
  %v1103 = vpop.f32.mrf.mxu0
  %v1104 = vpop.f32.mrf.mxu0
  %1105 = vdwg.mxu0
  %1106 = vmatprep.subr.bf16.mxu0 0
  %1107 = vmatpush1.bf16.msra.mxu0 %v785
  %1108 = vmatprep.subr.bf16.mxu0 0
  %1109 = vmatpush1.bf16.msra.mxu0 %v784
  %1110 = vmatprep.subr.bf16.mxu0 0
  %1111 = vmatpush1.bf16.msra.mxu0 %v783
  %1112 = vmatprep.subr.bf16.mxu0 0
  %1113 = vmatpush1.bf16.msra.mxu0 %v782
  %1114 = vmatprep.subr.bf16.mxu0 0
  %1115 = vmatpush1.bf16.msra.mxu0 %v781
  %1116 = vmatprep.subr.bf16.mxu0 0
  %1117 = vmatpush1.bf16.msra.mxu0 %v780
  %1118 = vmatprep.subr.bf16.mxu0 0
  %1119 = vmatpush1.bf16.msra.mxu0 %v779
  %1120 = vmatprep.subr.bf16.mxu0 0
  %1121 = vmatpush1.bf16.msra.mxu0 %v778
  %1122 = vmatprep.subr.bf16.mxu0 0
  %1123 = vmatpush2.bf16.msra.mxu0 %v793
  %1124 = vmatprep.subr.bf16.mxu0 0
  %1125 = vmatpush2.bf16.msra.mxu0 %v792
  %1126 = vmatprep.subr.bf16.mxu0 0
  %1127 = vmatpush2.bf16.msra.mxu0 %v791
  %1128 = vmatprep.subr.bf16.mxu0 0
  %1129 = vmatpush2.bf16.msra.mxu0 %v790
  %1130 = vmatprep.subr.bf16.mxu0 0
  %1131 = vmatpush2.bf16.msra.mxu0 %v789
  %1132 = vmatprep.subr.bf16.mxu0 0
  %1133 = vmatpush2.bf16.msra.mxu0 %v788
  %1134 = vmatprep.subr.bf16.mxu0 0
  %1135 = vmatpush2.bf16.msra.mxu0 %v787
  %1136 = vmatprep.subr.bf16.mxu0 0
  %1137 = vmatpush2.bf16.msra.mxu0 %v786
  %1138 = vmatprep.mubr.bf16.mxu0 %v267
  %1139 = vmatmul.mubr.bf16.gmra.mxu0 %v266
  %v1140 = vpop.f32.mrf.mxu0
  %v1141 = vadd.f32 %v1101, %v1140
  %v1142 = vpop.f32.mrf.mxu0
  %v1143 = vpop.f32.mrf.mxu0
  %v1144 = vpop.f32.mrf.mxu0
  %1145 = vdwg.mxu0
  %1146 = vmatprep.subr.bf16.mxu0 0
  %1147 = vmatpush1.bf16.msra.mxu0 %v801
  %1148 = vmatprep.subr.bf16.mxu0 0
  %1149 = vmatpush1.bf16.msra.mxu0 %v800
  %1150 = vmatprep.subr.bf16.mxu0 0
  %1151 = vmatpush1.bf16.msra.mxu0 %v799
  %1152 = vmatprep.subr.bf16.mxu0 0
  %1153 = vmatpush1.bf16.msra.mxu0 %v798
  %1154 = vmatprep.subr.bf16.mxu0 0
  %1155 = vmatpush1.bf16.msra.mxu0 %v797
  %1156 = vmatprep.subr.bf16.mxu0 0
  %1157 = vmatpush1.bf16.msra.mxu0 %v796
  %1158 = vmatprep.subr.bf16.mxu0 0
  %1159 = vmatpush1.bf16.msra.mxu0 %v795
  %1160 = vmatprep.subr.bf16.mxu0 0
  %1161 = vmatpush1.bf16.msra.mxu0 %v794
  %1162 = vmatprep.subr.bf16.mxu0 0
  %1163 = vmatpush2.bf16.msra.mxu0 0
  %1164 = vmatprep.subr.bf16.mxu0 0
  %1165 = vmatpush2.bf16.msra.mxu0 0
  %1166 = vmatprep.subr.bf16.mxu0 0
  %1167 = vmatpush2.bf16.msra.mxu0 0
  %1168 = vmatprep.subr.bf16.mxu0 0
  %1169 = vmatpush2.bf16.msra.mxu0 0
  %1170 = vmatprep.subr.bf16.mxu0 0
  %1171 = vmatpush2.bf16.msra.mxu0 0
  %1172 = vmatprep.subr.bf16.mxu0 0
  %1173 = vmatpush2.bf16.msra.mxu0 0
  %1174 = vmatprep.subr.bf16.mxu0 0
  %1175 = vmatpush2.bf16.msra.mxu0 0
  %1176 = vmatprep.subr.bf16.mxu0 0
  %1177 = vmatpush2.bf16.msra.mxu0 0
  %1178 = vmatprep.mubr.bf16.mxu0 0
  %1179 = vmatmul.mubr.bf16.gmra.mxu0 %v268
  %v1180 = vpop.f32.mrf.mxu0
  %v1181 = vadd.f32 %v1141, %v1180
  %v1182 = vpop.f32.mrf.mxu0
  %v1183 = vpop.f32.mrf.mxu0
  %v1184 = vpop.f32.mrf.mxu0
  %1185 = vdwg.mxu0
  %v1186 = vadd.f32 %v20, %v1181
  %1187 = vst [vmem:[#allocation2] sm:$0xff] %v1186
  // Predicated region
  $region18: #{_forward.3} parent=0 // pred_check
    %p1188 = pneg %p15
  $region19: #{_forward.3} parent=0 // pred_check_branch
    %1190 = sbr.rel (%p1188) target = $region21
  $region20: #{_forward.3} parent=0 // pred_region
    %v1191 = vld [vmem:[#allocation2] sm:$0xff]
    %v1192 = vld [vmem:[%s2] sm:$0x1]
    %v1194 = vlaneseq
    %v1195 = vshrl.u32 %v1194, 7
    %v1196 = vsub.s32 0, %v1195
    %v1197 = vrot.slane %v1192, %v1196
    %v1199 = vadd.f32 %v1191, %v1197
    %v1200 = vmax.f32 %v1199, 0.0
    %v1201 = vpack.c.bf16 %v1200, %v1200
    %1202 = vst [vmem:[%s3] sm:$0xf] %v1201
  $region21: #{_forward.3} parent=0 // pred_fallthru
    _
  // Predicated region
  $region22: #{_forward.3} parent=0 // pred_check
    _
  $region23: #{_forward.3} parent=0 // pred_check_branch
    %1204 = sbr.rel (0) target = $region25
  $region24: #{_forward.3} parent=0 // pred_region
    _
  $region25: #{_forward.3} parent=0 // pred_fallthru
    _
  // Predicated region
  $region26: #{_forward.3} parent=0 // pred_check
    _
  $region27: #{_forward.3} parent=0 // pred_check_branch
    %1206 = sbr.rel (0) target = $region29
  $region28: #{_forward.3} parent=0 // pred_region
    _
  $region29: #{_forward.3} parent=0 // pred_fallthru
    _

</llo_original>
